<compile_context>
chip_gen: v6e
topology: v6e:2x2x1
jax: 0.10.0
libtpu: 0.0.40
codegen_flags: <defaults>
</compile_context>

<pallas_src>
from functools import partial

import numpy as np
import jax
import jax.numpy as jnp
from jax import lax
from jax.experimental import pallas as pl
from jax.experimental.pallas import tpu as pltpu

# layers = np.array([1, 20, ..., 20, 2])  -> 11 Linear layers
LAYERS = [1, 20, 20, 20, 20, 20, 20, 20, 20, 20, 20, 2]
N_LIN = len(LAYERS) - 1          # 11 linear layers
N_HID = N_LIN - 2                # 9 hidden 20x20 layers (indices 1..9)
D = 20                           # hidden width
D_OUT = LAYERS[-1]               # 2


def _recip(s):
    """1/s: EUP approximate reciprocal seed + one Newton step (no VALU divide)."""
    r0 = pl.reciprocal(s, approx=True)
    return r0 * (2.0 - s * r0)


def _mlp_kernel(x_ref, w0_ref, wh_ref, wl_ref, bl_ref, out_ref, *, chunk, exp_dtype):
    """Feature-major MLP over one batch tile, processed in lane-dense chunks.

    x_ref:  (1, tile)       input batch tile (normalization already folded into w0)
    w0_ref: (20, 1)         folded layer-0 weight (its bias is folded into wh[0])
    wh_ref: (9, 21, 20)     hidden weights, bias-column-scaled, + sum row (c^T)
    wl_ref: (3, 20)         last layer: [0.1 * W_last * diag(c9); c9^T]
    bl_ref: (2, 1)          0.1 * b_last
    out_ref:(2, tile)
    """
    n_chunks = x_ref.shape[1] // chunk
    w0 = w0_ref[...]
    wl = wl_ref[...]
    bl = bl_ref[...]

    def chunk_body(c, carry):
        off = pl.multiple_of(c * chunk, chunk)
        x = x_ref[:, pl.ds(off, chunk)]                         # (1, chunk)

        # Layer 0 (in_dim == 1): outer-product broadcast, no MXU / no bias add
        # (bias is carried as exp(b0) inside wh[0]'s columns and sum row).
        g = jnp.exp((w0 * x).astype(exp_dtype))                 # (20, chunk), unnormalized

        # Hidden layers 1..9: one augmented MXU pass gives both W@g and sum(g);
        # softmax normalization is deferred and applied as a scalar-row multiply.
        for i in range(wh_ref.shape[0]):
            m = jnp.dot(wh_ref[i], g, preferred_element_type=jnp.float32)  # (21, chunk)
            r = _recip(m[D:D + 1, :])                           # (1, chunk) = 1/sum(prev e)
            g = jnp.exp((m[:D, :] * r).astype(exp_dtype))       # next unnormalized exp

        # Output layer: bias-fold + /10 already in wl/bl.
        m = jnp.dot(wl, g, preferred_element_type=jnp.float32)  # (3, chunk)
        r = _recip(m[D_OUT:D_OUT + 1, :])
        out_ref[:, pl.ds(off, chunk)] = m[:D_OUT, :] * r + bl
        return carry

    lax.fori_loop(0, n_chunks, chunk_body, 0)


def nn_forward(x, lb, ub, weights, biases, *, n_tile=8192, chunk=512, exp_dtype=None):
    """x: (N, 1) f32; lb/ub: (1, 1); weights[i]: (d_out, d_in); biases[i]: (d_out, 1)."""
    n = x.shape[0]

    # exp precision: bf16 only where the EUP/VPU have a bf16 path (v6e / v7x).
    if exp_dtype is None:
        kind = jax.devices()[0].device_kind.lower()
        bf16_ok = ("v6" in kind) or ("v7" in kind) or ("7x" in kind)
        exp_dtype = jnp.bfloat16 if bf16_ok else jnp.float32
    use_bf16 = np.dtype(exp_dtype) == np.dtype(jnp.bfloat16)
    w_dtype = jnp.bfloat16 if use_bf16 else jnp.float32

    # ---- batch tiling: lane-dense chunks, big grid steps, >= 2 steps when possible ----
    chunk = max(128, (int(chunk) // 128) * 128)
    n_chunks = -(-n // chunk)                              # ceil
    cpg = max(1, min(n_tile // chunk, n_chunks))           # chunks per grid step
    if n_chunks >= 2:
        cpg = max(1, min(cpg, n_chunks // 2))              # grid >= 2 -> both TCs on v7x
    tile = cpg * chunk
    n_steps = -(-n_chunks // cpg)
    n_padded = n_steps * tile

    # feature-major input, zero-padded along the batch (lane) axis
    x_t = jnp.pad(jnp.transpose(x.astype(jnp.float32)), ((0, 0), (0, n_padded - n)))

    # ---- fold parameters (host side, tiny) ----
    # input normalization folded into layer 0:  z0 = (W0/(ub-lb)) x + (b0 - W0*lb/(ub-lb))
    inv = 1.0 / (ub - lb)
    w0_fold = (weights[0] * inv).astype(jnp.float32)                  # (20, 1)
    b0_fold = biases[0] - weights[0] * (lb * inv)                     # (20, 1)

    # Bias folding: exp(z + b) = exp(z) * exp(b), so each layer's bias becomes a column
    # scaling c = exp(b) of the NEXT layer's weight, and the appended sum row is c^T
    # (so the MXU also produces sum(exp) for the deferred softmax normalization).
    cs = [jnp.exp(b0_fold)] + [jnp.exp(b) for b in biases[1:-1]]      # c_0 .. c_9, (20,1)
    wh_list = []
    for i in range(1, N_LIN - 1):                                     # hidden layers 1..9
        c_prev = jnp.transpose(cs[i - 1])                             # (1, 20)
        wh_list.append(jnp.concatenate([weights[i] * c_prev, c_prev], axis=0))  # (21, 20)
    wh = jnp.stack(wh_list, axis=0).astype(w_dtype)                   # (9, 21, 20)

    c_last = jnp.transpose(cs[-1])                                    # (1, 20) = exp(b_9)^T
    wl = jnp.concatenate([weights[-1] * c_last * 0.1, c_last], axis=0).astype(w_dtype)  # (3,20)
    bl = (biases[-1] * 0.1).astype(jnp.float32)                       # (2, 1)

    kernel = partial(_mlp_kernel, chunk=chunk, exp_dtype=exp_dtype)

    in_specs = [
        pl.BlockSpec((1, tile), lambda i: (0, i)),                    # batch tile of x
        # Constant index_maps -> the (packed) weights stay VMEM-resident across steps.
        pl.BlockSpec(w0_fold.shape, lambda i: (0, 0)),
        pl.BlockSpec(wh.shape, lambda i: (0, 0, 0)),
        pl.BlockSpec(wl.shape, lambda i: (0, 0)),
        pl.BlockSpec(bl.shape, lambda i: (0, 0)),
    ]
    out_spec = pl.BlockSpec((D_OUT, tile), lambda i: (0, i))          # lane-dense store

    flops = 2 * n_padded * (D + N_HID * (D + 1) * D + (D_OUT + 1) * D)
    cost = pl.CostEstimate(
        flops=flops,
        transcendentals=n_padded * ((N_HID + 1) * D + (N_HID + 2)),   # exps + reciprocals
        bytes_accessed=4 * n_padded * (1 + D_OUT),
    )

    out_t = pl.pallas_call(
        kernel,
        out_shape=jax.ShapeDtypeStruct((D_OUT, n_padded), jnp.float32),
        grid=(n_steps,),
        in_specs=in_specs,
        out_specs=out_spec,
        compiler_params=pltpu.CompilerParams(
            dimension_semantics=("parallel",),      # megacore sharding on v7x
        ),
        cost_estimate=cost,
    )(x_t, w0_fold, wh, wl, bl)

    # Back to the PyTorch-facing (N, 2) layout.
    return jnp.transpose(out_t[:, :n])


def init_params(key):
    """Xavier-normal (gain=2) weights, zero biases — matches the module's __init__.

    Weights in PyTorch nn.Linear layout (d_out, d_in); biases as (d_out, 1).
    """
    weights, biases = [], []
    keys = jax.random.split(key, N_LIN)
    for i in range(N_LIN):
        fan_in, fan_out = LAYERS[i], LAYERS[i + 1]
        std = 2.0 * np.sqrt(2.0 / (fan_in + fan_out))
        weights.append(std * jax.random.normal(keys[i], (fan_out, fan_in), jnp.float32))
        biases.append(jnp.zeros((fan_out, 1), jnp.float32))
    return weights, biases


def reference_forward(x, lb, ub, weights, biases):
    """Pure-JAX reference mirroring the PyTorch forward, for the correctness check."""
    a = (x - lb) / (ub - lb)
    for i in range(N_LIN - 1):
        z = a @ weights[i].T + biases[i].T
        a = jax.nn.softmax(z, axis=-1)
    return (a @ weights[-1].T + biases[-1].T) / 10.0


if __name__ == "__main__":
    key = jax.random.PRNGKey(0)
    k_x, k_p = jax.random.split(key)

    # Small, deterministic inputs consistent with the module (batch of scalar points):
    # 3000 points exercises padding, the multi-chunk inner loop and a >=2-step grid.
    n = 3000
    x = jax.random.uniform(k_x, (n, 1), jnp.float32, minval=0.0, maxval=1.0)
    lb = jnp.array([[0.0]], jnp.float32)   # synthetic domain bounds (xy_stack[0] / [-1])
    ub = jnp.array([[1.0]], jnp.float32)

    weights, biases = init_params(k_p)
    ref = reference_forward(x, lb, ub, weights, biases)

    # 1) f32-exp path: tight correctness check on every TPU generation.
    out = jax.block_until_ready(
        nn_forward(x, lb, ub, weights, biases, exp_dtype=jnp.float32))
    np.testing.assert_allclose(np.asarray(out), np.asarray(ref), rtol=2e-3, atol=1e-5)

    # 2) default path: bf16 exp auto-enabled on v6e/v7x (f32 elsewhere) — looser check.
    out_fast = jax.block_until_ready(nn_forward(x, lb, ub, weights, biases))
    np.testing.assert_allclose(np.asarray(out_fast), np.asarray(ref), rtol=1e-1, atol=2e-3)

    print("KERNEL_OK")
</pallas_src>

<mosaic_0001>
module attributes {stable_mosaic.version = 11 : i64} {
  func.func @_mlp_kernel(%arg0: i32, %arg1: memref<1x1536xf32, #tpu.memory_space<vmem>>, %arg2: memref<20x1xf32, #tpu.memory_space<vmem>>, %arg3: memref<9x21x20xf32, #tpu.memory_space<vmem>>, %arg4: memref<3x20xf32, #tpu.memory_space<vmem>>, %arg5: memref<2x1xf32, #tpu.memory_space<vmem>>, %arg6: memref<2x1536xf32, #tpu.memory_space<vmem>>) attributes {dimension_semantics = [#tpu.dimension_semantics<parallel>], iteration_bounds = array<i64: 2>, scalar_prefetch = 0 : i64, scratch_operands = 0 : i64, tpu.core_type = #tpu.core_type<tc>, window_params = [{transform_indices = @transform_0, window_bounds = array<i64: 1, 1536>}, {pipeline_mode = #tpu.pipeline_mode<synchronous>, transform_indices = @transform_1, window_bounds = array<i64: 20, 1>}, {pipeline_mode = #tpu.pipeline_mode<synchronous>, transform_indices = @transform_2, window_bounds = array<i64: 9, 21, 20>}, {pipeline_mode = #tpu.pipeline_mode<synchronous>, transform_indices = @transform_3, window_bounds = array<i64: 3, 20>}, {pipeline_mode = #tpu.pipeline_mode<synchronous>, transform_indices = @transform_4, window_bounds = array<i64: 2, 1>}, {transform_indices = @transform_5, window_bounds = array<i64: 2, 1536>}]} {
    %c0 = arith.constant 0 : index
    %c0_0 = arith.constant 0 : index
    %0 = vector.load %arg2[%c0, %c0_0] : memref<20x1xf32, #tpu.memory_space<vmem>>, vector<20x1xf32>
    %c0_1 = arith.constant 0 : index
    %c0_2 = arith.constant 0 : index
    %1 = vector.load %arg4[%c0_1, %c0_2] : memref<3x20xf32, #tpu.memory_space<vmem>>, vector<3x20xf32>
    %c0_3 = arith.constant 0 : index
    %c0_4 = arith.constant 0 : index
    %2 = vector.load %arg5[%c0_3, %c0_4] : memref<2x1xf32, #tpu.memory_space<vmem>>, vector<2x1xf32>
    %c0_i32 = arith.constant 0 : i32
    %c3_i32 = arith.constant 3 : i32
    %3 = arith.addi %c0_i32, %c3_i32 : i32
    %c1_i32 = arith.constant 1 : i32
    scf.for %arg7 = %c0_i32 to %3 step %c1_i32  : i32 {
      %c512_i32 = arith.constant 512 : i32
      %4 = arith.muli %arg7, %c512_i32 : i32
      %5 = tpu.assume_multiple %4, 512 : i32
      %c0_6 = arith.constant 0 : index
      %6 = arith.index_cast %5 : i32 to index
      %7 = vector.load %arg1[%c0_6, %6] : memref<1x1536xf32, #tpu.memory_space<vmem>>, vector<1x512xf32>
      %8 = vector.broadcast %0 : vector<20x1xf32> to vector<20x512xf32>
      %9 = vector.broadcast %7 : vector<1x512xf32> to vector<20x512xf32>
      %10 = arith.mulf %8, %9 : vector<20x512xf32>
      %11 = math.exp %10 : vector<20x512xf32>
      %c0_7 = arith.constant 0 : index
      %c0_8 = arith.constant 0 : index
      %c0_9 = arith.constant 0 : index
      %12 = vector.load %arg3[%c0_7, %c0_8, %c0_9] : memref<9x21x20xf32, #tpu.memory_space<vmem>>, vector<1x21x20xf32>
      %13 = vector.shape_cast %12 : vector<1x21x20xf32> to vector<21x20xf32>
      %cst = arith.constant dense<0.000000e+00> : vector<21x512xf32>
      %14 = tpu.matmul %13, %11, %cst {dimension_numbers = #tpu.dot_dimension_numbers<[1], [0], [0], [1], [0, 0, 1, 1], [], []>} : vector<21x20xf32>, vector<20x512xf32>, vector<21x512xf32> -> vector<21x512xf32>
      %15 = vector.extract_strided_slice %14 {offsets = [20, 0], sizes = [1, 512], strides = [1, 1]} : vector<21x512xf32> to vector<1x512xf32>
      %16 = tpu.reciprocal %15 {approx = true} : vector<1x512xf32> -> vector<1x512xf32>
      %17 = arith.mulf %15, %16 : vector<1x512xf32>
      %cst_10 = arith.constant 2.000000e+00 : f32
      %18 = vector.broadcast %cst_10 : f32 to vector<1x512xf32>
      %19 = arith.subf %18, %17 : vector<1x512xf32>
      %20 = arith.mulf %16, %19 : vector<1x512xf32>
      %21 = vector.extract_strided_slice %14 {offsets = [0, 0], sizes = [20, 512], strides = [1, 1]} : vector<21x512xf32> to vector<20x512xf32>
      %22 = vector.broadcast %20 : vector<1x512xf32> to vector<20x512xf32>
      %23 = arith.mulf %21, %22 : vector<20x512xf32>
      %24 = math.exp %23 : vector<20x512xf32>
      %c1 = arith.constant 1 : index
      %c0_11 = arith.constant 0 : index
      %c0_12 = arith.constant 0 : index
      %25 = vector.load %arg3[%c1, %c0_11, %c0_12] : memref<9x21x20xf32, #tpu.memory_space<vmem>>, vector<1x21x20xf32>
      %26 = vector.shape_cast %25 : vector<1x21x20xf32> to vector<21x20xf32>
      %cst_13 = arith.constant dense<0.000000e+00> : vector<21x512xf32>
      %27 = tpu.matmul %26, %24, %cst_13 {dimension_numbers = #tpu.dot_dimension_numbers<[1], [0], [0], [1], [0, 0, 1, 1], [], []>} : vector<21x20xf32>, vector<20x512xf32>, vector<21x512xf32> -> vector<21x512xf32>
      %28 = vector.extract_strided_slice %27 {offsets = [20, 0], sizes = [1, 512], strides = [1, 1]} : vector<21x512xf32> to vector<1x512xf32>
      %29 = tpu.reciprocal %28 {approx = true} : vector<1x512xf32> -> vector<1x512xf32>
      %30 = arith.mulf %28, %29 : vector<1x512xf32>
      %cst_14 = arith.constant 2.000000e+00 : f32
      %31 = vector.broadcast %cst_14 : f32 to vector<1x512xf32>
      %32 = arith.subf %31, %30 : vector<1x512xf32>
      %33 = arith.mulf %29, %32 : vector<1x512xf32>
      %34 = vector.extract_strided_slice %27 {offsets = [0, 0], sizes = [20, 512], strides = [1, 1]} : vector<21x512xf32> to vector<20x512xf32>
      %35 = vector.broadcast %33 : vector<1x512xf32> to vector<20x512xf32>
      %36 = arith.mulf %34, %35 : vector<20x512xf32>
      %37 = math.exp %36 : vector<20x512xf32>
      %c2 = arith.constant 2 : index
      %c0_15 = arith.constant 0 : index
      %c0_16 = arith.constant 0 : index
      %38 = vector.load %arg3[%c2, %c0_15, %c0_16] : memref<9x21x20xf32, #tpu.memory_space<vmem>>, vector<1x21x20xf32>
      %39 = vector.shape_cast %38 : vector<1x21x20xf32> to vector<21x20xf32>
      %cst_17 = arith.constant dense<0.000000e+00> : vector<21x512xf32>
      %40 = tpu.matmul %39, %37, %cst_17 {dimension_numbers = #tpu.dot_dimension_numbers<[1], [0], [0], [1], [0, 0, 1, 1], [], []>} : vector<21x20xf32>, vector<20x512xf32>, vector<21x512xf32> -> vector<21x512xf32>
      %41 = vector.extract_strided_slice %40 {offsets = [20, 0], sizes = [1, 512], strides = [1, 1]} : vector<21x512xf32> to vector<1x512xf32>
      %42 = tpu.reciprocal %41 {approx = true} : vector<1x512xf32> -> vector<1x512xf32>
      %43 = arith.mulf %41, %42 : vector<1x512xf32>
      %cst_18 = arith.constant 2.000000e+00 : f32
      %44 = vector.broadcast %cst_18 : f32 to vector<1x512xf32>
      %45 = arith.subf %44, %43 : vector<1x512xf32>
      %46 = arith.mulf %42, %45 : vector<1x512xf32>
      %47 = vector.extract_strided_slice %40 {offsets = [0, 0], sizes = [20, 512], strides = [1, 1]} : vector<21x512xf32> to vector<20x512xf32>
      %48 = vector.broadcast %46 : vector<1x512xf32> to vector<20x512xf32>
      %49 = arith.mulf %47, %48 : vector<20x512xf32>
      %50 = math.exp %49 : vector<20x512xf32>
      %c3 = arith.constant 3 : index
      %c0_19 = arith.constant 0 : index
      %c0_20 = arith.constant 0 : index
      %51 = vector.load %arg3[%c3, %c0_19, %c0_20] : memref<9x21x20xf32, #tpu.memory_space<vmem>>, vector<1x21x20xf32>
      %52 = vector.shape_cast %51 : vector<1x21x20xf32> to vector<21x20xf32>
      %cst_21 = arith.constant dense<0.000000e+00> : vector<21x512xf32>
      %53 = tpu.matmul %52, %50, %cst_21 {dimension_numbers = #tpu.dot_dimension_numbers<[1], [0], [0], [1], [0, 0, 1, 1], [], []>} : vector<21x20xf32>, vector<20x512xf32>, vector<21x512xf32> -> vector<21x512xf32>
      %54 = vector.extract_strided_slice %53 {offsets = [20, 0], sizes = [1, 512], strides = [1, 1]} : vector<21x512xf32> to vector<1x512xf32>
      %55 = tpu.reciprocal %54 {approx = true} : vector<1x512xf32> -> vector<1x512xf32>
      %56 = arith.mulf %54, %55 : vector<1x512xf32>
      %cst_22 = arith.constant 2.000000e+00 : f32
      %57 = vector.broadcast %cst_22 : f32 to vector<1x512xf32>
      %58 = arith.subf %57, %56 : vector<1x512xf32>
      %59 = arith.mulf %55, %58 : vector<1x512xf32>
      %60 = vector.extract_strided_slice %53 {offsets = [0, 0], sizes = [20, 512], strides = [1, 1]} : vector<21x512xf32> to vector<20x512xf32>
      %61 = vector.broadcast %59 : vector<1x512xf32> to vector<20x512xf32>
      %62 = arith.mulf %60, %61 : vector<20x512xf32>
      %63 = math.exp %62 : vector<20x512xf32>
      %c4 = arith.constant 4 : index
      %c0_23 = arith.constant 0 : index
      %c0_24 = arith.constant 0 : index
      %64 = vector.load %arg3[%c4, %c0_23, %c0_24] : memref<9x21x20xf32, #tpu.memory_space<vmem>>, vector<1x21x20xf32>
      %65 = vector.shape_cast %64 : vector<1x21x20xf32> to vector<21x20xf32>
      %cst_25 = arith.constant dense<0.000000e+00> : vector<21x512xf32>
      %66 = tpu.matmul %65, %63, %cst_25 {dimension_numbers = #tpu.dot_dimension_numbers<[1], [0], [0], [1], [0, 0, 1, 1], [], []>} : vector<21x20xf32>, vector<20x512xf32>, vector<21x512xf32> -> vector<21x512xf32>
      %67 = vector.extract_strided_slice %66 {offsets = [20, 0], sizes = [1, 512], strides = [1, 1]} : vector<21x512xf32> to vector<1x512xf32>
      %68 = tpu.reciprocal %67 {approx = true} : vector<1x512xf32> -> vector<1x512xf32>
      %69 = arith.mulf %67, %68 : vector<1x512xf32>
      %cst_26 = arith.constant 2.000000e+00 : f32
      %70 = vector.broadcast %cst_26 : f32 to vector<1x512xf32>
      %71 = arith.subf %70, %69 : vector<1x512xf32>
      %72 = arith.mulf %68, %71 : vector<1x512xf32>
      %73 = vector.extract_strided_slice %66 {offsets = [0, 0], sizes = [20, 512], strides = [1, 1]} : vector<21x512xf32> to vector<20x512xf32>
      %74 = vector.broadcast %72 : vector<1x512xf32> to vector<20x512xf32>
      %75 = arith.mulf %73, %74 : vector<20x512xf32>
      %76 = math.exp %75 : vector<20x512xf32>
      %c5 = arith.constant 5 : index
      %c0_27 = arith.constant 0 : index
      %c0_28 = arith.constant 0 : index
      %77 = vector.load %arg3[%c5, %c0_27, %c0_28] : memref<9x21x20xf32, #tpu.memory_space<vmem>>, vector<1x21x20xf32>
      %78 = vector.shape_cast %77 : vector<1x21x20xf32> to vector<21x20xf32>
      %cst_29 = arith.constant dense<0.000000e+00> : vector<21x512xf32>
      %79 = tpu.matmul %78, %76, %cst_29 {dimension_numbers = #tpu.dot_dimension_numbers<[1], [0], [0], [1], [0, 0, 1, 1], [], []>} : vector<21x20xf32>, vector<20x512xf32>, vector<21x512xf32> -> vector<21x512xf32>
      %80 = vector.extract_strided_slice %79 {offsets = [20, 0], sizes = [1, 512], strides = [1, 1]} : vector<21x512xf32> to vector<1x512xf32>
      %81 = tpu.reciprocal %80 {approx = true} : vector<1x512xf32> -> vector<1x512xf32>
      %82 = arith.mulf %80, %81 : vector<1x512xf32>
      %cst_30 = arith.constant 2.000000e+00 : f32
      %83 = vector.broadcast %cst_30 : f32 to vector<1x512xf32>
      %84 = arith.subf %83, %82 : vector<1x512xf32>
      %85 = arith.mulf %81, %84 : vector<1x512xf32>
      %86 = vector.extract_strided_slice %79 {offsets = [0, 0], sizes = [20, 512], strides = [1, 1]} : vector<21x512xf32> to vector<20x512xf32>
      %87 = vector.broadcast %85 : vector<1x512xf32> to vector<20x512xf32>
      %88 = arith.mulf %86, %87 : vector<20x512xf32>
      %89 = math.exp %88 : vector<20x512xf32>
      %c6 = arith.constant 6 : index
      %c0_31 = arith.constant 0 : index
      %c0_32 = arith.constant 0 : index
      %90 = vector.load %arg3[%c6, %c0_31, %c0_32] : memref<9x21x20xf32, #tpu.memory_space<vmem>>, vector<1x21x20xf32>
      %91 = vector.shape_cast %90 : vector<1x21x20xf32> to vector<21x20xf32>
      %cst_33 = arith.constant dense<0.000000e+00> : vector<21x512xf32>
      %92 = tpu.matmul %91, %89, %cst_33 {dimension_numbers = #tpu.dot_dimension_numbers<[1], [0], [0], [1], [0, 0, 1, 1], [], []>} : vector<21x20xf32>, vector<20x512xf32>, vector<21x512xf32> -> vector<21x512xf32>
      %93 = vector.extract_strided_slice %92 {offsets = [20, 0], sizes = [1, 512], strides = [1, 1]} : vector<21x512xf32> to vector<1x512xf32>
      %94 = tpu.reciprocal %93 {approx = true} : vector<1x512xf32> -> vector<1x512xf32>
      %95 = arith.mulf %93, %94 : vector<1x512xf32>
      %cst_34 = arith.constant 2.000000e+00 : f32
      %96 = vector.broadcast %cst_34 : f32 to vector<1x512xf32>
      %97 = arith.subf %96, %95 : vector<1x512xf32>
      %98 = arith.mulf %94, %97 : vector<1x512xf32>
      %99 = vector.extract_strided_slice %92 {offsets = [0, 0], sizes = [20, 512], strides = [1, 1]} : vector<21x512xf32> to vector<20x512xf32>
      %100 = vector.broadcast %98 : vector<1x512xf32> to vector<20x512xf32>
      %101 = arith.mulf %99, %100 : vector<20x512xf32>
      %102 = math.exp %101 : vector<20x512xf32>
      %c7 = arith.constant 7 : index
      %c0_35 = arith.constant 0 : index
      %c0_36 = arith.constant 0 : index
      %103 = vector.load %arg3[%c7, %c0_35, %c0_36] : memref<9x21x20xf32, #tpu.memory_space<vmem>>, vector<1x21x20xf32>
      %104 = vector.shape_cast %103 : vector<1x21x20xf32> to vector<21x20xf32>
      %cst_37 = arith.constant dense<0.000000e+00> : vector<21x512xf32>
      %105 = tpu.matmul %104, %102, %cst_37 {dimension_numbers = #tpu.dot_dimension_numbers<[1], [0], [0], [1], [0, 0, 1, 1], [], []>} : vector<21x20xf32>, vector<20x512xf32>, vector<21x512xf32> -> vector<21x512xf32>
      %106 = vector.extract_strided_slice %105 {offsets = [20, 0], sizes = [1, 512], strides = [1, 1]} : vector<21x512xf32> to vector<1x512xf32>
      %107 = tpu.reciprocal %106 {approx = true} : vector<1x512xf32> -> vector<1x512xf32>
      %108 = arith.mulf %106, %107 : vector<1x512xf32>
      %cst_38 = arith.constant 2.000000e+00 : f32
      %109 = vector.broadcast %cst_38 : f32 to vector<1x512xf32>
      %110 = arith.subf %109, %108 : vector<1x512xf32>
      %111 = arith.mulf %107, %110 : vector<1x512xf32>
      %112 = vector.extract_strided_slice %105 {offsets = [0, 0], sizes = [20, 512], strides = [1, 1]} : vector<21x512xf32> to vector<20x512xf32>
      %113 = vector.broadcast %111 : vector<1x512xf32> to vector<20x512xf32>
      %114 = arith.mulf %112, %113 : vector<20x512xf32>
      %115 = math.exp %114 : vector<20x512xf32>
      %c8 = arith.constant 8 : index
      %c0_39 = arith.constant 0 : index
      %c0_40 = arith.constant 0 : index
      %116 = vector.load %arg3[%c8, %c0_39, %c0_40] : memref<9x21x20xf32, #tpu.memory_space<vmem>>, vector<1x21x20xf32>
      %117 = vector.shape_cast %116 : vector<1x21x20xf32> to vector<21x20xf32>
      %cst_41 = arith.constant dense<0.000000e+00> : vector<21x512xf32>
      %118 = tpu.matmul %117, %115, %cst_41 {dimension_numbers = #tpu.dot_dimension_numbers<[1], [0], [0], [1], [0, 0, 1, 1], [], []>} : vector<21x20xf32>, vector<20x512xf32>, vector<21x512xf32> -> vector<21x512xf32>
      %119 = vector.extract_strided_slice %118 {offsets = [20, 0], sizes = [1, 512], strides = [1, 1]} : vector<21x512xf32> to vector<1x512xf32>
      %120 = tpu.reciprocal %119 {approx = true} : vector<1x512xf32> -> vector<1x512xf32>
      %121 = arith.mulf %119, %120 : vector<1x512xf32>
      %cst_42 = arith.constant 2.000000e+00 : f32
      %122 = vector.broadcast %cst_42 : f32 to vector<1x512xf32>
      %123 = arith.subf %122, %121 : vector<1x512xf32>
      %124 = arith.mulf %120, %123 : vector<1x512xf32>
      %125 = vector.extract_strided_slice %118 {offsets = [0, 0], sizes = [20, 512], strides = [1, 1]} : vector<21x512xf32> to vector<20x512xf32>
      %126 = vector.broadcast %124 : vector<1x512xf32> to vector<20x512xf32>
      %127 = arith.mulf %125, %126 : vector<20x512xf32>
      %128 = math.exp %127 : vector<20x512xf32>
      %cst_43 = arith.constant dense<0.000000e+00> : vector<3x512xf32>
      %129 = tpu.matmul %1, %128, %cst_43 {dimension_numbers = #tpu.dot_dimension_numbers<[1], [0], [0], [1], [0, 0, 1, 1], [], []>} : vector<3x20xf32>, vector<20x512xf32>, vector<3x512xf32> -> vector<3x512xf32>
      %130 = vector.extract_strided_slice %129 {offsets = [2, 0], sizes = [1, 512], strides = [1, 1]} : vector<3x512xf32> to vector<1x512xf32>
      %131 = tpu.reciprocal %130 {approx = true} : vector<1x512xf32> -> vector<1x512xf32>
      %132 = arith.mulf %130, %131 : vector<1x512xf32>
      %cst_44 = arith.constant 2.000000e+00 : f32
      %133 = vector.broadcast %cst_44 : f32 to vector<1x512xf32>
      %134 = arith.subf %133, %132 : vector<1x512xf32>
      %135 = arith.mulf %131, %134 : vector<1x512xf32>
      %136 = vector.extract_strided_slice %129 {offsets = [0, 0], sizes = [2, 512], strides = [1, 1]} : vector<3x512xf32> to vector<2x512xf32>
      %137 = vector.broadcast %135 : vector<1x512xf32> to vector<2x512xf32>
      %138 = arith.mulf %136, %137 : vector<2x512xf32>
      %139 = vector.broadcast %2 : vector<2x1xf32> to vector<2x512xf32>
      %140 = arith.addf %138, %139 : vector<2x512xf32>
      %c0_45 = arith.constant 0 : index
      %141 = arith.index_cast %5 : i32 to index
      %142 = vector.load %arg6[%c0_45, %141] : memref<2x1536xf32, #tpu.memory_space<vmem>>, vector<2x512xf32>
      tpu.vector_store %arg6[%c0_45, %141], %140 {strides = array<i32>} : memref<2x1536xf32, #tpu.memory_space<vmem>>, vector<2x512xf32>,
    }
    %c3_i32_5 = arith.constant 3 : i32
    return
  }
  func.func @transform_0(%arg0: i32) -> (i32, i32) {
    %c0_i32 = arith.constant 0 : i32
    %c0_i32_0 = arith.constant 0 : i32
    return %c0_i32, %arg0 : i32, i32
  }
  func.func @transform_1(%arg0: i32) -> (i32, i32) {
    %c0_i32 = arith.constant 0 : i32
    %c0_i32_0 = arith.constant 0 : i32
    %c0_i32_1 = arith.constant 0 : i32
    return %c0_i32, %c0_i32_0 : i32, i32
  }
  func.func @transform_2(%arg0: i32) -> (i32, i32, i32) {
    %c0_i32 = arith.constant 0 : i32
    %c0_i32_0 = arith.constant 0 : i32
    %c0_i32_1 = arith.constant 0 : i32
    %c0_i32_2 = arith.constant 0 : i32
    return %c0_i32, %c0_i32_0, %c0_i32_1 : i32, i32, i32
  }
  func.func @transform_3(%arg0: i32) -> (i32, i32) {
    %c0_i32 = arith.constant 0 : i32
    %c0_i32_0 = arith.constant 0 : i32
    %c0_i32_1 = arith.constant 0 : i32
    return %c0_i32, %c0_i32_0 : i32, i32
  }
  func.func @transform_4(%arg0: i32) -> (i32, i32) {
    %c0_i32 = arith.constant 0 : i32
    %c0_i32_0 = arith.constant 0 : i32
    %c0_i32_1 = arith.constant 0 : i32
    return %c0_i32, %c0_i32_0 : i32, i32
  }
  func.func @transform_5(%arg0: i32) -> (i32, i32) {
    %c0_i32 = arith.constant 0 : i32
    %c0_i32_0 = arith.constant 0 : i32
    return %c0_i32, %arg0 : i32, i32
  }
}

</mosaic_0001>

<llo_original>
// kernel: tpu_custom_call.1
$region0: #{tpu_custom_call.1}
  #allocation0 [shape = 'u32[]', space=smem, size = 0x4, offset = 0x4, fixed_abs, tag = 'smem constant byte address 0x4 - core index']
  #allocation1 [shape = 'u32[144,128]{1,0:T(1,128)}', space=vmem, size = 0x12000, scoped, tag = 'internal scratch']
  %s0 = inlined_call_operand.vmem [shape: f32[1,3072], index: 0, kind: input, shape index: {}]
  %s1 = inlined_call_operand.vmem [shape: f32[20,1], index: 1, kind: input, shape index: {}]
  %s2 = inlined_call_operand.hbm [shape: f32[9,21,20], index: 2, kind: input, shape index: {}]
  %s3 = inlined_call_operand.vmem [shape: f32[3,20], index: 3, kind: input, shape index: {}]
  %s4 = inlined_call_operand.vmem [shape: f32[2,1], index: 4, kind: input, shape index: {}]
  %s5 = inlined_call_operand.hbm [shape: f32[2,3072], index: 5, kind: output, shape index: {}]
  %s6 = sld [smem:[#allocation0]]
  $region64: #{tpu_custom_call.1} parent=0
    _
  %s8 = ssub.s32 1, %s6
  %s9 = scalar_select 0, %s8, %s6
  $region1: #{tpu_custom_call.1} parent=0
    #allocation2 [shape = 'u8[110592]{0}', space=vmem, size = 0x1b000, scoped, tag = 'input window, operand 2, single buffered']
    #allocation3 [shape = 's32[2]{0}', space=sflag, size = 0x8, scoped, tag = 'scoped memory for tpu_custom_call.1']
    #allocation4 [shape = 's32[2]{0}', space=sflag, size = 0x8, scoped, tag = 'scoped memory for tpu_custom_call.1']
    #allocation5 [shape = 'u8[24576]{0}', space=vmem, size = 0x6000, scoped, tag = 'output window, operand 0']
    %10 = vsyncpa [#allocation3], 0
    %11 = vsyncpa [#allocation4], 0
    %s12 = scalar_lea.sflag [#allocation4], 1
    %13 = vsyncpa %s12, 0
    loop: start=0, step=1, limit=4
    $region2: #{tpu_custom_call.1} parent=1 // loop_pre_header
      _
    $region3: #{tpu_custom_call.1} parent=1 // loop_header
      %s15 = sphi 0, %s19
      %p16 = scmp.ge.s32.totalorder %s15, 4
      %s25 = sphi 0, %s27
      %s28 = sphi 0, %s25
      %s29 = sphi 0, %s28
      %s45 = sphi 0, %s29
      %s49 = sphi 0, %s49
      %s51 = sphi 0, %s49
      %s52 = sphi 0, %s51
      %s66 = sphi 0, %s52
      %s70 = sphi 0, %s70
      %s72 = sphi 0, %s70
      %s73 = sphi 0, %s72
      %s87 = sphi 0, %s73
      %s91 = sphi 0, %s91
      %s93 = sphi 0, %s91
      %s94 = sphi 0, %s93
      %s108 = sphi 0, %s94
      %s112 = sphi 0, %s112
      %s114 = sphi 0, %s112
      %s115 = sphi 0, %s114
      %s129 = sphi 0, %s115
      %s135 = sphi 0, %s137
      %s138 = sphi 0, %s135
      %s139 = sphi 0, %s138
      %s155 = sphi 0, %s139
    $region4: #{tpu_custom_call.1} parent=1 // loop_header_branch
      %18 = sbr.rel (%p16) target = $region8
    $region5: #{tpu_custom_call.1} parent=1 // loop_body
      %s20 = ssub.s32 %s15, 1
      %s21 = ssub.s32 %s15, 2
      %s22 = sadd.s32 %s15, 1
      %s23 = ssub.s32 %s15, %s22
      %p24 = scmp.eq.s32.totalorder %s23, 0
      %s26 = sadd.s32 %s25, 1
      %s27 = scalar_select %p24, %s25, %s26
      %p30 = pneg %p24
      %p31 = scmp.eq.s32.totalorder %s15, 1
      %p32 = por %p30, %p31
      %p33 = scmp.ne.s32.totalorder %s25, %s28
      %p34 = scmp.eq.s32.totalorder %s15, 0
      %p35 = por %p33, %p34
      %p36 = scmp.ne.s32.totalorder %s25, %s28
      %p37 = scmp.eq.s32.totalorder %s20, 1
      %p38 = por %p36, %p37
      %p39 = scmp.ne.s32.totalorder %s28, %s29
      %p40 = scmp.eq.s32.totalorder %s20, 0
      %p41 = por %p39, %p40
      %p42 = scmp.ne.s32.totalorder %s28, %s29
      %p43 = scmp.eq.s32.totalorder %s21, 1
      %p44 = por %p42, %p43
      %p46 = scmp.ne.s32.totalorder %s29, %s45
      %p47 = scmp.eq.s32.totalorder %s21, 0
      %p48 = por %p46, %p47
      %s50 = sadd.s32 %s49, 1
      %p53 = scmp.eq.s32.totalorder %s15, 1
      %p54 = scmp.ne.s32.totalorder %s49, %s51
      %p55 = scmp.eq.s32.totalorder %s15, 0
      %p56 = por %p54, %p55
      %p57 = scmp.ne.s32.totalorder %s49, %s51
      %p58 = scmp.eq.s32.totalorder %s20, 1
      %p59 = por %p57, %p58
      %p60 = scmp.ne.s32.totalorder %s51, %s52
      %p61 = scmp.eq.s32.totalorder %s20, 0
      %p62 = por %p60, %p61
      %p63 = scmp.ne.s32.totalorder %s51, %s52
      %p64 = scmp.eq.s32.totalorder %s21, 1
      %p65 = por %p63, %p64
      %p67 = scmp.ne.s32.totalorder %s52, %s66
      %p68 = scmp.eq.s32.totalorder %s21, 0
      %p69 = por %p67, %p68
      %s71 = sadd.s32 %s70, 1
      %p74 = scmp.eq.s32.totalorder %s15, 1
      %p75 = scmp.ne.s32.totalorder %s70, %s72
      %p76 = scmp.eq.s32.totalorder %s15, 0
      %p77 = por %p75, %p76
      %p78 = scmp.ne.s32.totalorder %s70, %s72
      %p79 = scmp.eq.s32.totalorder %s20, 1
      %p80 = por %p78, %p79
      %p81 = scmp.ne.s32.totalorder %s72, %s73
      %p82 = scmp.eq.s32.totalorder %s20, 0
      %p83 = por %p81, %p82
      %p84 = scmp.ne.s32.totalorder %s72, %s73
      %p85 = scmp.eq.s32.totalorder %s21, 1
      %p86 = por %p84, %p85
      %p88 = scmp.ne.s32.totalorder %s73, %s87
      %p89 = scmp.eq.s32.totalorder %s21, 0
      %p90 = por %p88, %p89
      %s92 = sadd.s32 %s91, 1
      %p95 = scmp.eq.s32.totalorder %s15, 1
      %p96 = scmp.ne.s32.totalorder %s91, %s93
      %p97 = scmp.eq.s32.totalorder %s15, 0
      %p98 = por %p96, %p97
      %p99 = scmp.ne.s32.totalorder %s91, %s93
      %p100 = scmp.eq.s32.totalorder %s20, 1
      %p101 = por %p99, %p100
      %p102 = scmp.ne.s32.totalorder %s93, %s94
      %p103 = scmp.eq.s32.totalorder %s20, 0
      %p104 = por %p102, %p103
      %p105 = scmp.ne.s32.totalorder %s93, %s94
      %p106 = scmp.eq.s32.totalorder %s21, 1
      %p107 = por %p105, %p106
      %p109 = scmp.ne.s32.totalorder %s94, %s108
      %p110 = scmp.eq.s32.totalorder %s21, 0
      %p111 = por %p109, %p110
      %s113 = sadd.s32 %s112, 1
      %p116 = scmp.eq.s32.totalorder %s15, 1
      %p117 = scmp.ne.s32.totalorder %s112, %s114
      %p118 = scmp.eq.s32.totalorder %s15, 0
      %p119 = por %p117, %p118
      %p120 = scmp.ne.s32.totalorder %s112, %s114
      %p121 = scmp.eq.s32.totalorder %s20, 1
      %p122 = por %p120, %p121
      %p123 = scmp.ne.s32.totalorder %s114, %s115
      %p124 = scmp.eq.s32.totalorder %s20, 0
      %p125 = por %p123, %p124
      %p126 = scmp.ne.s32.totalorder %s114, %s115
      %p127 = scmp.eq.s32.totalorder %s21, 1
      %p128 = por %p126, %p127
      %p130 = scmp.ne.s32.totalorder %s115, %s129
      %p131 = scmp.eq.s32.totalorder %s21, 0
      %p132 = por %p130, %p131
      %s133 = ssub.s32 %s15, %s22
      %p134 = scmp.eq.s32.totalorder %s133, 0
      %s136 = sadd.s32 %s135, 1
      %s137 = scalar_select %p134, %s135, %s136
      %p140 = pneg %p134
      %p141 = scmp.eq.s32.totalorder %s15, 1
      %p142 = por %p140, %p141
      %p143 = scmp.ne.s32.totalorder %s135, %s138
      %p144 = scmp.eq.s32.totalorder %s15, 0
      %p145 = por %p143, %p144
      %p146 = scmp.ne.s32.totalorder %s135, %s138
      %p147 = scmp.eq.s32.totalorder %s20, 1
      %p148 = por %p146, %p147
      %p149 = scmp.ne.s32.totalorder %s138, %s139
      %p150 = scmp.eq.s32.totalorder %s20, 0
      %p151 = por %p149, %p150
      %p152 = scmp.ne.s32.totalorder %s138, %s139
      %p153 = scmp.eq.s32.totalorder %s21, 1
      %p154 = por %p152, %p153
      %p156 = scmp.ne.s32.totalorder %s139, %s155
      %p157 = scmp.eq.s32.totalorder %s21, 0
      %p158 = por %p156, %p157
      %p159 = scmp.le.s32.totalorder 1, %s15
      %p160 = scmp.lt.s32.totalorder %s15, 3
      %p161 = pnand %p159, %p160
      %p162 = pneg %p161
      // Predicated region
      $region9: #{tpu_custom_call.1} parent=5 // pred_check
        _
      $region10: #{tpu_custom_call.1} parent=5 // pred_check_branch
        %164 = sbr.rel (%p161) target = $region12
      $region11: #{tpu_custom_call.1} parent=5 // pred_region
        %s165 = ssub.s32 %s15, 1
        // Predicated region
        $region13: #{tpu_custom_call.1} parent=11 // pred_check
          %p166 = pneg %p62
        $region14: #{tpu_custom_call.1} parent=11 // pred_check_branch
          %168 = sbr.rel (%p166) target = $region16
        $region15: #{tpu_custom_call.1} parent=11 // pred_region
          _
        $region16: #{tpu_custom_call.1} parent=11 // pred_fallthru
          _
        // Predicated region
        $region17: #{tpu_custom_call.1} parent=11 // pred_check
          %p169 = pneg %p83
        $region18: #{tpu_custom_call.1} parent=11 // pred_check_branch
          %171 = sbr.rel (%p169) target = $region20
        $region19: #{tpu_custom_call.1} parent=11 // pred_region
          %s173 = ssub.s32 3456, 3456
          %174 = vsyncadd [#allocation3], %s173
          %s175 = sshll.u32 [#allocation2], 4
          %s176 = int_to_ptr.vmem [resolvable:$true] %s175
          %181 = dma.hbm_to_vmem [thread:$0]  %s2, 3456, %s176, [#allocation3], 128, 128, 8
        $region20: #{tpu_custom_call.1} parent=11 // pred_fallthru
          _
        // Predicated region
        $region21: #{tpu_custom_call.1} parent=11 // pred_check
          %p182 = pneg %p104
        $region22: #{tpu_custom_call.1} parent=11 // pred_check_branch
          %184 = sbr.rel (%p182) target = $region24
        $region23: #{tpu_custom_call.1} parent=11 // pred_region
          _
        $region24: #{tpu_custom_call.1} parent=11 // pred_fallthru
          _
        // Predicated region
        $region25: #{tpu_custom_call.1} parent=11 // pred_check
          %p185 = pneg %p125
        $region26: #{tpu_custom_call.1} parent=11 // pred_check_branch
          %187 = sbr.rel (%p185) target = $region28
        $region27: #{tpu_custom_call.1} parent=11 // pred_region
          _
        $region28: #{tpu_custom_call.1} parent=11 // pred_fallthru
          _
      $region12: #{tpu_custom_call.1} parent=5 // pred_fallthru
        _
      %p188 = scmp.lt.s32.totalorder %s15, 2
      // Predicated region
      $region29: #{tpu_custom_call.1} parent=5 // pred_check
        %p189 = pneg %p188
      $region30: #{tpu_custom_call.1} parent=5 // pred_check_branch
        %191 = sbr.rel (%p189) target = $region32
      $region31: #{tpu_custom_call.1} parent=5 // pred_region
        // Predicated region
        $region33: #{tpu_custom_call.1} parent=31 // pred_check
          %p192 = pneg %p35
        $region34: #{tpu_custom_call.1} parent=31 // pred_check_branch
          %194 = sbr.rel (%p192) target = $region36
        $region35: #{tpu_custom_call.1} parent=31 // pred_region
          %s195 = smul.u32 12, %s15
          %p196 = scmp.lt.s32.totalorder %s195, 23
          %s197 = scalar_select %p196, %s195, 23
          %s198 = scalar_lea.vmem %s0, %s197
          %s199 = smul.u32 12, %s15
        $region36: #{tpu_custom_call.1} parent=31 // pred_fallthru
          _
      $region32: #{tpu_custom_call.1} parent=5 // pred_fallthru
        _
      %p200 = scmp.le.s32.totalorder 1, %s15
      %p201 = scmp.lt.s32.totalorder %s15, 3
      %p202 = pnand %p200, %p201
      %p203 = pneg %p202
      // Predicated region
      $region37: #{tpu_custom_call.1} parent=5 // pred_check
        _
      $region38: #{tpu_custom_call.1} parent=5 // pred_check_branch
        %205 = sbr.rel (%p202) target = $region40
      $region39: #{tpu_custom_call.1} parent=5 // pred_region
        %s206 = ssub.s32 %s15, 1
        // Predicated region
        $region41: #{tpu_custom_call.1} parent=39 // pred_check
          %p207 = pneg %p83
        $region42: #{tpu_custom_call.1} parent=39 // pred_check_branch
          %209 = sbr.rel (%p207) target = $region44
        $region43: #{tpu_custom_call.1} parent=39 // pred_region
          %210 = dma.done [#allocation3], 3456
        $region44: #{tpu_custom_call.1} parent=39 // pred_fallthru
          _
        %s211 = smul.u32 12, %s20
        %p212 = scmp.lt.s32.totalorder %s211, 23
        %s213 = scalar_select %p212, %s211, 23
        %s214 = scalar_lea.vmem %s0, %s213
        %p215 = pneg %p41
        %p216 = pneg %p38
        %p217 = pneg %p62
        %p218 = pneg %p59
        %p219 = pneg %p83
        %p220 = pneg %p80
        %p221 = pneg %p104
        %p222 = pneg %p101
        %p223 = pneg %p125
        %p224 = pneg %p122
        %p225 = pneg %p151
        %p226 = pneg %p148
        %s227 = sand.u32 %s138, 1
        %s228 = scalar_lea.sflag [#allocation4], %s227
        %s229 = sand.u32 %s138, 1
        %s230 = smul.addr %s229, 24
        %s231 = scalar_lea.vmem [#allocation5], %s230
        %s232 = smul.u32 12, %s20
        %p233 = scmp.lt.s32.totalorder %s232, 23
        %s234 = scalar_select %p233, %s232, 23
        %s235 = scalar_lea.vmem %s0, %s234
        %s236 = smul.u32 12, %s20
        %s237 = smul.u32 12, %s20
        %v238 = vld [vmem:[%s1] sm:$0xff]
        %v239 = vld [vmem:[%s1 + $0x8] sm:$0xff]
        %v240 = vld [vmem:[%s1 + $0x10] sm:$0xf]
        %v241 = vld [vmem:[%s3] sm:$0x7]
        %v242 = vld [vmem:[%s4] sm:$0x3]
        loop: start=0, step=1, limit=3
        $region45: #{tpu_custom_call.1} parent=39 // loop_pre_header
          _
        $region46: #{tpu_custom_call.1} parent=39 // loop_header
          %s244 = sphi 0, %s248
          %p245 = scmp.ge.s32.totalorder %s244, 3
        $region47: #{tpu_custom_call.1} parent=39 // loop_header_branch
          %247 = sbr.rel (%p245) target = $region51
        $region48: #{tpu_custom_call.1} parent=39 // loop_body
          %s249 = smul.u32 %s244, 512
          %s250 = sshra.s32 %s249, 7
          %s251 = sand.u32 %s249, 127
          %s252 = scalar_lea.vmem %s235, %s250
          %v253 = vld [vmem:[%s252] sm:$0xf]
          %255 = vset.pattern.permute.xlu0 0
          %256 = vperm.xlu0 %255, %v238
          %v257 = vpop.permute.xlu0 %256
          %260 = vset.pattern.permute.xlu0 0
          %261 = vperm.xlu0 %260, %v239
          %v262 = vpop.permute.xlu0 %261
          %265 = vset.pattern.permute.xlu0 0
          %266 = vperm.xlu0 %265, %v240
          %v267 = vpop.permute.xlu0 %266
          %v270 = vlaneseq
          %v271 = vshrl.u32 %v270, 7
          %v272 = vsub.s32 0, %v271
          %v273 = vrot.slane %v253, %v272
          %v274 = vlaneseq
          %v275 = vshrl.u32 %v274, 7
          %v276 = vsub.s32 1, %v275
          %v277 = vrot.slane %v253, %v276
          %v278 = vlaneseq
          %v279 = vshrl.u32 %v278, 7
          %v280 = vsub.s32 2, %v279
          %v281 = vrot.slane %v253, %v280
          %v282 = vlaneseq
          %v283 = vshrl.u32 %v282, 7
          %v284 = vsub.s32 3, %v283
          %v285 = vrot.slane %v253, %v284
          %v290 = vmul.f32 %v257, %v273
          %v291 = vmul.f32 %v257, %v277
          %v292 = vmul.f32 %v257, %v281
          %v293 = vmul.f32 %v257, %v285
          %v294 = vmul.f32 %v262, %v273
          %v295 = vmul.f32 %v262, %v277
          %v296 = vmul.f32 %v262, %v281
          %v297 = vmul.f32 %v262, %v285
          %v298 = vmul.f32 %v267, %v273
          %v299 = vmul.f32 %v267, %v277
          %v300 = vmul.f32 %v267, %v281
          %v301 = vmul.f32 %v267, %v285
          %v302 = vmul.f32 %v290, 1.442695
          %v303 = vpow.pop %v302
          %v304 = vmul.f32 %v291, 1.442695
          %v305 = vpow.pop %v304
          %v306 = vmul.f32 %v292, 1.442695
          %v307 = vpow.pop %v306
          %v308 = vmul.f32 %v293, 1.442695
          %v309 = vpow.pop %v308
          %v310 = vmul.f32 %v294, 1.442695
          %v311 = vpow.pop %v310
          %v312 = vmul.f32 %v295, 1.442695
          %v313 = vpow.pop %v312
          %v314 = vmul.f32 %v296, 1.442695
          %v315 = vpow.pop %v314
          %v316 = vmul.f32 %v297, 1.442695
          %v317 = vpow.pop %v316
          %v318 = vmul.f32 %v298, 1.442695
          %v319 = vpow.pop %v318
          %v320 = vmul.f32 %v299, 1.442695
          %v321 = vpow.pop %v320
          %v322 = vmul.f32 %v300, 1.442695
          %v323 = vpow.pop %v322
          %v324 = vmul.f32 %v301, 1.442695
          %v325 = vpow.pop %v324
          %v326 = vld [vmem:[#allocation2] sm:$0xff]
          %v327 = vld [vmem:[#allocation2 + $0x8] sm:$0xff]
          %v328 = vld [vmem:[#allocation2 + $0x10] sm:$0x1f]
          %vm329 = vcmask 162816
          %v331 = vsel %vm329, %v326, 0
          %v334 = vsel %vm329, %v327, 0
          %v337 = vsel %vm329, %v328, 0
          %vm339 = vcmask 1043456
          %v341 = vsel %vm339, %v319, 0
          %v344 = vsel %vm339, %v321, 0
          %v347 = vsel %vm339, %v323, 0
          %v350 = vsel %vm339, %v325, 0
          %352 = vmatprep.subr.mxu0 0.0
          %353 = vmatpush1.msra.mxu0 0.0
          %354 = vmatprep.subr.mxu0 0.0
          %355 = vmatpush1.msra.mxu0 0.0
          %356 = vmatprep.subr.mxu0 0.0
          %357 = vmatpush1.msra.mxu0 0.0
          %358 = vmatprep.subr.mxu0 0.0
          %359 = vmatpush1.msra.mxu0 0.0
          %360 = vmatprep.subr.mxu0 0.0
          %361 = vmatpush1.msra.mxu0 0.0
          %362 = vmatprep.subr.mxu0 0.0
          %363 = vmatpush1.msra.mxu0 0.0
          %364 = vmatprep.subr.mxu0 0.0
          %365 = vmatpush1.msra.mxu0 0.0
          %366 = vmatprep.subr.mxu0 0.0
          %367 = vmatpush1.msra.mxu0 0.0
          %368 = vmatprep.subr.mxu0 0.0
          %369 = vmatpush1.msra.mxu0 0.0
          %370 = vmatprep.subr.mxu0 0.0
          %371 = vmatpush1.msra.mxu0 0.0
          %372 = vmatprep.subr.mxu0 0.0
          %373 = vmatpush1.msra.mxu0 0.0
          %374 = vmatprep.subr.mxu0 0.0
          %375 = vmatpush1.msra.mxu0 0.0
          %376 = vmatprep.subr.mxu0 0.0
          %377 = vmatpush1.msra.mxu0 0.0
          %378 = vmatprep.subr.mxu0 %v344
          %379 = vmatpush1.msra.mxu0 %v341
          %380 = vmatprep.subr.mxu0 %v313
          %381 = vmatpush1.msra.mxu0 %v311
          %382 = vmatprep.subr.mxu0 %v305
          %383 = vmatpush1.msra.mxu0 %v303
          %384 = vmatprep.subr.mxu0 0.0
          %385 = vmatpush2.msra.mxu0 0.0
          %386 = vmatprep.subr.mxu0 0.0
          %387 = vmatpush2.msra.mxu0 0.0
          %388 = vmatprep.subr.mxu0 0.0
          %389 = vmatpush2.msra.mxu0 0.0
          %390 = vmatprep.subr.mxu0 0.0
          %391 = vmatpush2.msra.mxu0 0.0
          %392 = vmatprep.subr.mxu0 0.0
          %393 = vmatpush2.msra.mxu0 0.0
          %394 = vmatprep.subr.mxu0 0.0
          %395 = vmatpush2.msra.mxu0 0.0
          %396 = vmatprep.subr.mxu0 0.0
          %397 = vmatpush2.msra.mxu0 0.0
          %398 = vmatprep.subr.mxu0 0.0
          %399 = vmatpush2.msra.mxu0 0.0
          %400 = vmatprep.subr.mxu0 0.0
          %401 = vmatpush2.msra.mxu0 0.0
          %402 = vmatprep.subr.mxu0 0.0
          %403 = vmatpush2.msra.mxu0 0.0
          %404 = vmatprep.subr.mxu0 0.0
          %405 = vmatpush2.msra.mxu0 0.0
          %406 = vmatprep.subr.mxu0 0.0
          %407 = vmatpush2.msra.mxu0 0.0
          %408 = vmatprep.subr.mxu0 0.0
          %409 = vmatpush2.msra.mxu0 0.0
          %410 = vmatprep.subr.mxu0 0.0
          %411 = vmatpush2.msra.mxu0 0.0
          %412 = vmatprep.subr.mxu0 0.0
          %413 = vmatpush2.msra.mxu0 0.0
          %414 = vmatprep.subr.mxu0 0.0
          %415 = vmatpush2.msra.mxu0 0.0
          %416 = vmatprep.mubr.f32.mxu0 0.0
          %417 = vmatmul.mubr.f32.gmra.mxu0 %v331
          %v418 = vpop.f32.mrf.mxu0
          %v419 = vadd.f32 0.0, %v418
          %v420 = vpop.f32.mrf.mxu0
          %v421 = vadd.f32 0.0, %v420
          %422 = vmatprep.mubr.f32.mxu0 0.0
          %423 = vmatmul.mubr.f32.gmra.mxu0 %v334
          %v424 = vpop.f32.mrf.mxu0
          %v425 = vadd.f32 0.0, %v424
          %v426 = vpop.f32.mrf.mxu0
          %v427 = vadd.f32 0.0, %v426
          %428 = vmatprep.mubr.f32.mxu0 0.0
          %429 = vmatmul.mubr.f32.gmra.mxu0 %v337
          %v430 = vpop.f32.mrf.mxu0
          %v431 = vadd.f32 0.0, %v430
          %v432 = vpop.f32.mrf.mxu0
          %v433 = vadd.f32 0.0, %v432
          %434 = vdwg.mxu0
          %435 = vmatprep.subr.mxu0 0.0
          %436 = vmatpush1.msra.mxu0 0.0
          %437 = vmatprep.subr.mxu0 0.0
          %438 = vmatpush1.msra.mxu0 0.0
          %439 = vmatprep.subr.mxu0 0.0
          %440 = vmatpush1.msra.mxu0 0.0
          %441 = vmatprep.subr.mxu0 0.0
          %442 = vmatpush1.msra.mxu0 0.0
          %443 = vmatprep.subr.mxu0 0.0
          %444 = vmatpush1.msra.mxu0 0.0
          %445 = vmatprep.subr.mxu0 0.0
          %446 = vmatpush1.msra.mxu0 0.0
          %447 = vmatprep.subr.mxu0 0.0
          %448 = vmatpush1.msra.mxu0 0.0
          %449 = vmatprep.subr.mxu0 0.0
          %450 = vmatpush1.msra.mxu0 0.0
          %451 = vmatprep.subr.mxu0 0.0
          %452 = vmatpush1.msra.mxu0 0.0
          %453 = vmatprep.subr.mxu0 0.0
          %454 = vmatpush1.msra.mxu0 0.0
          %455 = vmatprep.subr.mxu0 0.0
          %456 = vmatpush1.msra.mxu0 0.0
          %457 = vmatprep.subr.mxu0 0.0
          %458 = vmatpush1.msra.mxu0 0.0
          %459 = vmatprep.subr.mxu0 0.0
          %460 = vmatpush1.msra.mxu0 0.0
          %461 = vmatprep.subr.mxu0 %v350
          %462 = vmatpush1.msra.mxu0 %v347
          %463 = vmatprep.subr.mxu0 %v317
          %464 = vmatpush1.msra.mxu0 %v315
          %465 = vmatprep.subr.mxu0 %v309
          %466 = vmatpush1.msra.mxu0 %v307
          %467 = vmatprep.subr.mxu0 0.0
          %468 = vmatpush2.msra.mxu0 0.0
          %469 = vmatprep.subr.mxu0 0.0
          %470 = vmatpush2.msra.mxu0 0.0
          %471 = vmatprep.subr.mxu0 0.0
          %472 = vmatpush2.msra.mxu0 0.0
          %473 = vmatprep.subr.mxu0 0.0
          %474 = vmatpush2.msra.mxu0 0.0
          %475 = vmatprep.subr.mxu0 0.0
          %476 = vmatpush2.msra.mxu0 0.0
          %477 = vmatprep.subr.mxu0 0.0
          %478 = vmatpush2.msra.mxu0 0.0
          %479 = vmatprep.subr.mxu0 0.0
          %480 = vmatpush2.msra.mxu0 0.0
          %481 = vmatprep.subr.mxu0 0.0
          %482 = vmatpush2.msra.mxu0 0.0
          %483 = vmatprep.subr.mxu0 0.0
          %484 = vmatpush2.msra.mxu0 0.0
          %485 = vmatprep.subr.mxu0 0.0
          %486 = vmatpush2.msra.mxu0 0.0
          %487 = vmatprep.subr.mxu0 0.0
          %488 = vmatpush2.msra.mxu0 0.0
          %489 = vmatprep.subr.mxu0 0.0
          %490 = vmatpush2.msra.mxu0 0.0
          %491 = vmatprep.subr.mxu0 0.0
          %492 = vmatpush2.msra.mxu0 0.0
          %493 = vmatprep.subr.mxu0 0.0
          %494 = vmatpush2.msra.mxu0 0.0
          %495 = vmatprep.subr.mxu0 0.0
          %496 = vmatpush2.msra.mxu0 0.0
          %497 = vmatprep.subr.mxu0 0.0
          %498 = vmatpush2.msra.mxu0 0.0
          %499 = vmatprep.mubr.f32.mxu0 0.0
          %500 = vmatmul.mubr.f32.gmra.mxu0 %v331
          %v501 = vpop.f32.mrf.mxu0
          %v502 = vadd.f32 0.0, %v501
          %v503 = vpop.f32.mrf.mxu0
          %v504 = vadd.f32 0.0, %v503
          %505 = vmatprep.mubr.f32.mxu0 0.0
          %506 = vmatmul.mubr.f32.gmra.mxu0 %v334
          %v507 = vpop.f32.mrf.mxu0
          %v508 = vadd.f32 0.0, %v507
          %v509 = vpop.f32.mrf.mxu0
          %v510 = vadd.f32 0.0, %v509
          %511 = vmatprep.mubr.f32.mxu0 0.0
          %512 = vmatmul.mubr.f32.gmra.mxu0 %v337
          %v513 = vpop.f32.mrf.mxu0
          %v514 = vadd.f32 0.0, %v513
          %v515 = vpop.f32.mrf.mxu0
          %v516 = vadd.f32 0.0, %v515
          %517 = vdwg.mxu0
          %v518 = vrcp.pop %v431
          %v519 = vrcp.pop %v433
          %v520 = vrcp.pop %v514
          %v521 = vrcp.pop %v516
          %v522 = vmul.f32 %v431, %v518
          %v523 = vmul.f32 %v433, %v519
          %v524 = vmul.f32 %v514, %v520
          %v525 = vmul.f32 %v516, %v521
          %v526 = vsub.f32 2.0, %v522
          %v527 = vsub.f32 2.0, %v523
          %v528 = vsub.f32 2.0, %v524
          %v529 = vsub.f32 2.0, %v525
          %v530 = vmul.f32 %v518, %v526
          %v531 = vmul.f32 %v519, %v527
          %v532 = vmul.f32 %v520, %v528
          %v533 = vmul.f32 %v521, %v529
          %v534 = vlaneseq
          %v535 = vshrl.u32 %v534, 7
          %v536 = vsub.s32 4, %v535
          %v537 = vrot.slane %v530, %v536
          %v538 = vlaneseq
          %v539 = vshrl.u32 %v538, 7
          %v540 = vsub.s32 4, %v539
          %v541 = vrot.slane %v531, %v540
          %v542 = vlaneseq
          %v543 = vshrl.u32 %v542, 7
          %v544 = vsub.s32 4, %v543
          %v545 = vrot.slane %v532, %v544
          %v546 = vlaneseq
          %v547 = vshrl.u32 %v546, 7
          %v548 = vsub.s32 4, %v547
          %v549 = vrot.slane %v533, %v548
          %v550 = vmul.f32 %v419, %v537
          %v551 = vmul.f32 %v421, %v541
          %v552 = vmul.f32 %v502, %v545
          %v553 = vmul.f32 %v504, %v549
          %v554 = vmul.f32 %v425, %v537
          %v555 = vmul.f32 %v427, %v541
          %v556 = vmul.f32 %v508, %v545
          %v557 = vmul.f32 %v510, %v549
          %v558 = vmul.f32 %v431, %v537
          %v559 = vmul.f32 %v433, %v541
          %v560 = vmul.f32 %v514, %v545
          %v561 = vmul.f32 %v516, %v549
          %v562 = vmul.f32 %v550, 1.442695
          %v563 = vpow.pop %v562
          %v564 = vmul.f32 %v551, 1.442695
          %v565 = vpow.pop %v564
          %v566 = vmul.f32 %v552, 1.442695
          %v567 = vpow.pop %v566
          %v568 = vmul.f32 %v553, 1.442695
          %v569 = vpow.pop %v568
          %v570 = vmul.f32 %v554, 1.442695
          %v571 = vpow.pop %v570
          %v572 = vmul.f32 %v555, 1.442695
          %v573 = vpow.pop %v572
          %v574 = vmul.f32 %v556, 1.442695
          %v575 = vpow.pop %v574
          %v576 = vmul.f32 %v557, 1.442695
          %v577 = vpow.pop %v576
          %v578 = vmul.f32 %v558, 1.442695
          %v579 = vpow.pop %v578
          %v580 = vmul.f32 %v559, 1.442695
          %v581 = vpow.pop %v580
          %v582 = vmul.f32 %v560, 1.442695
          %v583 = vpow.pop %v582
          %v584 = vmul.f32 %v561, 1.442695
          %v585 = vpow.pop %v584
          %s586 = scalar_lea.vmem [#allocation2], 24
          %v587 = vld [vmem:[%s586] sm:$0xff]
          %v588 = vld [vmem:[%s586 + $0x8] sm:$0xff]
          %v589 = vld [vmem:[%s586 + $0x10] sm:$0x1f]
          %v591 = vsel %vm329, %v587, 0
          %v594 = vsel %vm329, %v588, 0
          %v597 = vsel %vm329, %v589, 0
          %v600 = vsel %vm339, %v579, 0
          %v603 = vsel %vm339, %v581, 0
          %v606 = vsel %vm339, %v583, 0
          %v609 = vsel %vm339, %v585, 0
          %611 = vmatprep.subr.mxu0 0.0
          %612 = vmatpush1.msra.mxu0 0.0
          %613 = vmatprep.subr.mxu0 0.0
          %614 = vmatpush1.msra.mxu0 0.0
          %615 = vmatprep.subr.mxu0 0.0
          %616 = vmatpush1.msra.mxu0 0.0
          %617 = vmatprep.subr.mxu0 0.0
          %618 = vmatpush1.msra.mxu0 0.0
          %619 = vmatprep.subr.mxu0 0.0
          %620 = vmatpush1.msra.mxu0 0.0
          %621 = vmatprep.subr.mxu0 0.0
          %622 = vmatpush1.msra.mxu0 0.0
          %623 = vmatprep.subr.mxu0 0.0
          %624 = vmatpush1.msra.mxu0 0.0
          %625 = vmatprep.subr.mxu0 0.0
          %626 = vmatpush1.msra.mxu0 0.0
          %627 = vmatprep.subr.mxu0 0.0
          %628 = vmatpush1.msra.mxu0 0.0
          %629 = vmatprep.subr.mxu0 0.0
          %630 = vmatpush1.msra.mxu0 0.0
          %631 = vmatprep.subr.mxu0 0.0
          %632 = vmatpush1.msra.mxu0 0.0
          %633 = vmatprep.subr.mxu0 0.0
          %634 = vmatpush1.msra.mxu0 0.0
          %635 = vmatprep.subr.mxu0 0.0
          %636 = vmatpush1.msra.mxu0 0.0
          %637 = vmatprep.subr.mxu0 %v603
          %638 = vmatpush1.msra.mxu0 %v600
          %639 = vmatprep.subr.mxu0 %v573
          %640 = vmatpush1.msra.mxu0 %v571
          %641 = vmatprep.subr.mxu0 %v565
          %642 = vmatpush1.msra.mxu0 %v563
          %643 = vmatprep.subr.mxu0 0.0
          %644 = vmatpush2.msra.mxu0 0.0
          %645 = vmatprep.subr.mxu0 0.0
          %646 = vmatpush2.msra.mxu0 0.0
          %647 = vmatprep.subr.mxu0 0.0
          %648 = vmatpush2.msra.mxu0 0.0
          %649 = vmatprep.subr.mxu0 0.0
          %650 = vmatpush2.msra.mxu0 0.0
          %651 = vmatprep.subr.mxu0 0.0
          %652 = vmatpush2.msra.mxu0 0.0
          %653 = vmatprep.subr.mxu0 0.0
          %654 = vmatpush2.msra.mxu0 0.0
          %655 = vmatprep.subr.mxu0 0.0
          %656 = vmatpush2.msra.mxu0 0.0
          %657 = vmatprep.subr.mxu0 0.0
          %658 = vmatpush2.msra.mxu0 0.0
          %659 = vmatprep.subr.mxu0 0.0
          %660 = vmatpush2.msra.mxu0 0.0
          %661 = vmatprep.subr.mxu0 0.0
          %662 = vmatpush2.msra.mxu0 0.0
          %663 = vmatprep.subr.mxu0 0.0
          %664 = vmatpush2.msra.mxu0 0.0
          %665 = vmatprep.subr.mxu0 0.0
          %666 = vmatpush2.msra.mxu0 0.0
          %667 = vmatprep.subr.mxu0 0.0
          %668 = vmatpush2.msra.mxu0 0.0
          %669 = vmatprep.subr.mxu0 0.0
          %670 = vmatpush2.msra.mxu0 0.0
          %671 = vmatprep.subr.mxu0 0.0
          %672 = vmatpush2.msra.mxu0 0.0
          %673 = vmatprep.subr.mxu0 0.0
          %674 = vmatpush2.msra.mxu0 0.0
          %675 = vmatprep.mubr.f32.mxu0 0.0
          %676 = vmatmul.mubr.f32.gmra.mxu0 %v591
          %v677 = vpop.f32.mrf.mxu0
          %v678 = vadd.f32 0.0, %v677
          %v679 = vpop.f32.mrf.mxu0
          %v680 = vadd.f32 0.0, %v679
          %681 = vmatprep.mubr.f32.mxu0 0.0
          %682 = vmatmul.mubr.f32.gmra.mxu0 %v594
          %v683 = vpop.f32.mrf.mxu0
          %v684 = vadd.f32 0.0, %v683
          %v685 = vpop.f32.mrf.mxu0
          %v686 = vadd.f32 0.0, %v685
          %687 = vmatprep.mubr.f32.mxu0 0.0
          %688 = vmatmul.mubr.f32.gmra.mxu0 %v597
          %v689 = vpop.f32.mrf.mxu0
          %v690 = vadd.f32 0.0, %v689
          %v691 = vpop.f32.mrf.mxu0
          %v692 = vadd.f32 0.0, %v691
          %693 = vdwg.mxu0
          %694 = vmatprep.subr.mxu0 0.0
          %695 = vmatpush1.msra.mxu0 0.0
          %696 = vmatprep.subr.mxu0 0.0
          %697 = vmatpush1.msra.mxu0 0.0
          %698 = vmatprep.subr.mxu0 0.0
          %699 = vmatpush1.msra.mxu0 0.0
          %700 = vmatprep.subr.mxu0 0.0
          %701 = vmatpush1.msra.mxu0 0.0
          %702 = vmatprep.subr.mxu0 0.0
          %703 = vmatpush1.msra.mxu0 0.0
          %704 = vmatprep.subr.mxu0 0.0
          %705 = vmatpush1.msra.mxu0 0.0
          %706 = vmatprep.subr.mxu0 0.0
          %707 = vmatpush1.msra.mxu0 0.0
          %708 = vmatprep.subr.mxu0 0.0
          %709 = vmatpush1.msra.mxu0 0.0
          %710 = vmatprep.subr.mxu0 0.0
          %711 = vmatpush1.msra.mxu0 0.0
          %712 = vmatprep.subr.mxu0 0.0
          %713 = vmatpush1.msra.mxu0 0.0
          %714 = vmatprep.subr.mxu0 0.0
          %715 = vmatpush1.msra.mxu0 0.0
          %716 = vmatprep.subr.mxu0 0.0
          %717 = vmatpush1.msra.mxu0 0.0
          %718 = vmatprep.subr.mxu0 0.0
          %719 = vmatpush1.msra.mxu0 0.0
          %720 = vmatprep.subr.mxu0 %v609
          %721 = vmatpush1.msra.mxu0 %v606
          %722 = vmatprep.subr.mxu0 %v577
          %723 = vmatpush1.msra.mxu0 %v575
          %724 = vmatprep.subr.mxu0 %v569
          %725 = vmatpush1.msra.mxu0 %v567
          %726 = vmatprep.subr.mxu0 0.0
          %727 = vmatpush2.msra.mxu0 0.0
          %728 = vmatprep.subr.mxu0 0.0
          %729 = vmatpush2.msra.mxu0 0.0
          %730 = vmatprep.subr.mxu0 0.0
          %731 = vmatpush2.msra.mxu0 0.0
          %732 = vmatprep.subr.mxu0 0.0
          %733 = vmatpush2.msra.mxu0 0.0
          %734 = vmatprep.subr.mxu0 0.0
          %735 = vmatpush2.msra.mxu0 0.0
          %736 = vmatprep.subr.mxu0 0.0
          %737 = vmatpush2.msra.mxu0 0.0
          %738 = vmatprep.subr.mxu0 0.0
          %739 = vmatpush2.msra.mxu0 0.0
          %740 = vmatprep.subr.mxu0 0.0
          %741 = vmatpush2.msra.mxu0 0.0
          %742 = vmatprep.subr.mxu0 0.0
          %743 = vmatpush2.msra.mxu0 0.0
          %744 = vmatprep.subr.mxu0 0.0
          %745 = vmatpush2.msra.mxu0 0.0
          %746 = vmatprep.subr.mxu0 0.0
          %747 = vmatpush2.msra.mxu0 0.0
          %748 = vmatprep.subr.mxu0 0.0
          %749 = vmatpush2.msra.mxu0 0.0
          %750 = vmatprep.subr.mxu0 0.0
          %751 = vmatpush2.msra.mxu0 0.0
          %752 = vmatprep.subr.mxu0 0.0
          %753 = vmatpush2.msra.mxu0 0.0
          %754 = vmatprep.subr.mxu0 0.0
          %755 = vmatpush2.msra.mxu0 0.0
          %756 = vmatprep.subr.mxu0 0.0
          %757 = vmatpush2.msra.mxu0 0.0
          %758 = vmatprep.mubr.f32.mxu0 0.0
          %759 = vmatmul.mubr.f32.gmra.mxu0 %v591
          %v760 = vpop.f32.mrf.mxu0
          %v761 = vadd.f32 0.0, %v760
          %v762 = vpop.f32.mrf.mxu0
          %v763 = vadd.f32 0.0, %v762
          %764 = vmatprep.mubr.f32.mxu0 0.0
          %765 = vmatmul.mubr.f32.gmra.mxu0 %v594
          %v766 = vpop.f32.mrf.mxu0
          %v767 = vadd.f32 0.0, %v766
          %v768 = vpop.f32.mrf.mxu0
          %v769 = vadd.f32 0.0, %v768
          %770 = vmatprep.mubr.f32.mxu0 0.0
          %771 = vmatmul.mubr.f32.gmra.mxu0 %v597
          %v772 = vpop.f32.mrf.mxu0
          %v773 = vadd.f32 0.0, %v772
          %v774 = vpop.f32.mrf.mxu0
          %v775 = vadd.f32 0.0, %v774
          %776 = vdwg.mxu0
          %v777 = vrcp.pop %v690
          %v778 = vrcp.pop %v692
          %v779 = vrcp.pop %v773
          %v780 = vrcp.pop %v775
          %v781 = vmul.f32 %v690, %v777
          %v782 = vmul.f32 %v692, %v778
          %v783 = vmul.f32 %v773, %v779
          %v784 = vmul.f32 %v775, %v780
          %v785 = vsub.f32 2.0, %v781
          %v786 = vsub.f32 2.0, %v782
          %v787 = vsub.f32 2.0, %v783
          %v788 = vsub.f32 2.0, %v784
          %v789 = vmul.f32 %v777, %v785
          %v790 = vmul.f32 %v778, %v786
          %v791 = vmul.f32 %v779, %v787
          %v792 = vmul.f32 %v780, %v788
          %v793 = vlaneseq
          %v794 = vshrl.u32 %v793, 7
          %v795 = vsub.s32 4, %v794
          %v796 = vrot.slane %v789, %v795
          %v797 = vlaneseq
          %v798 = vshrl.u32 %v797, 7
          %v799 = vsub.s32 4, %v798
          %v800 = vrot.slane %v790, %v799
          %v801 = vlaneseq
          %v802 = vshrl.u32 %v801, 7
          %v803 = vsub.s32 4, %v802
          %v804 = vrot.slane %v791, %v803
          %v805 = vlaneseq
          %v806 = vshrl.u32 %v805, 7
          %v807 = vsub.s32 4, %v806
          %v808 = vrot.slane %v792, %v807
          %v809 = vmul.f32 %v678, %v796
          %v810 = vmul.f32 %v680, %v800
          %v811 = vmul.f32 %v761, %v804
          %v812 = vmul.f32 %v763, %v808
          %v813 = vmul.f32 %v684, %v796
          %v814 = vmul.f32 %v686, %v800
          %v815 = vmul.f32 %v767, %v804
          %v816 = vmul.f32 %v769, %v808
          %v817 = vmul.f32 %v690, %v796
          %v818 = vmul.f32 %v692, %v800
          %v819 = vmul.f32 %v773, %v804
          %v820 = vmul.f32 %v775, %v808
          %v821 = vmul.f32 %v809, 1.442695
          %v822 = vpow.pop %v821
          %v823 = vmul.f32 %v810, 1.442695
          %v824 = vpow.pop %v823
          %v825 = vmul.f32 %v811, 1.442695
          %v826 = vpow.pop %v825
          %v827 = vmul.f32 %v812, 1.442695
          %v828 = vpow.pop %v827
          %v829 = vmul.f32 %v813, 1.442695
          %v830 = vpow.pop %v829
          %v831 = vmul.f32 %v814, 1.442695
          %v832 = vpow.pop %v831
          %v833 = vmul.f32 %v815, 1.442695
          %v834 = vpow.pop %v833
          %v835 = vmul.f32 %v816, 1.442695
          %v836 = vpow.pop %v835
          %v837 = vmul.f32 %v817, 1.442695
          %v838 = vpow.pop %v837
          %v839 = vmul.f32 %v818, 1.442695
          %v840 = vpow.pop %v839
          %v841 = vmul.f32 %v819, 1.442695
          %v842 = vpow.pop %v841
          %v843 = vmul.f32 %v820, 1.442695
          %v844 = vpow.pop %v843
          %s845 = scalar_lea.vmem [#allocation2], 48
          %v846 = vld [vmem:[%s845] sm:$0xff]
          %v847 = vld [vmem:[%s845 + $0x8] sm:$0xff]
          %v848 = vld [vmem:[%s845 + $0x10] sm:$0x1f]
          %v850 = vsel %vm329, %v846, 0
          %v853 = vsel %vm329, %v847, 0
          %v856 = vsel %vm329, %v848, 0
          %v859 = vsel %vm339, %v838, 0
          %v862 = vsel %vm339, %v840, 0
          %v865 = vsel %vm339, %v842, 0
          %v868 = vsel %vm339, %v844, 0
          %870 = vmatprep.subr.mxu0 0.0
          %871 = vmatpush1.msra.mxu0 0.0
          %872 = vmatprep.subr.mxu0 0.0
          %873 = vmatpush1.msra.mxu0 0.0
          %874 = vmatprep.subr.mxu0 0.0
          %875 = vmatpush1.msra.mxu0 0.0
          %876 = vmatprep.subr.mxu0 0.0
          %877 = vmatpush1.msra.mxu0 0.0
          %878 = vmatprep.subr.mxu0 0.0
          %879 = vmatpush1.msra.mxu0 0.0
          %880 = vmatprep.subr.mxu0 0.0
          %881 = vmatpush1.msra.mxu0 0.0
          %882 = vmatprep.subr.mxu0 0.0
          %883 = vmatpush1.msra.mxu0 0.0
          %884 = vmatprep.subr.mxu0 0.0
          %885 = vmatpush1.msra.mxu0 0.0
          %886 = vmatprep.subr.mxu0 0.0
          %887 = vmatpush1.msra.mxu0 0.0
          %888 = vmatprep.subr.mxu0 0.0
          %889 = vmatpush1.msra.mxu0 0.0
          %890 = vmatprep.subr.mxu0 0.0
          %891 = vmatpush1.msra.mxu0 0.0
          %892 = vmatprep.subr.mxu0 0.0
          %893 = vmatpush1.msra.mxu0 0.0
          %894 = vmatprep.subr.mxu0 0.0
          %895 = vmatpush1.msra.mxu0 0.0
          %896 = vmatprep.subr.mxu0 %v862
          %897 = vmatpush1.msra.mxu0 %v859
          %898 = vmatprep.subr.mxu0 %v832
          %899 = vmatpush1.msra.mxu0 %v830
          %900 = vmatprep.subr.mxu0 %v824
          %901 = vmatpush1.msra.mxu0 %v822
          %902 = vmatprep.subr.mxu0 0.0
          %903 = vmatpush2.msra.mxu0 0.0
          %904 = vmatprep.subr.mxu0 0.0
          %905 = vmatpush2.msra.mxu0 0.0
          %906 = vmatprep.subr.mxu0 0.0
          %907 = vmatpush2.msra.mxu0 0.0
          %908 = vmatprep.subr.mxu0 0.0
          %909 = vmatpush2.msra.mxu0 0.0
          %910 = vmatprep.subr.mxu0 0.0
          %911 = vmatpush2.msra.mxu0 0.0
          %912 = vmatprep.subr.mxu0 0.0
          %913 = vmatpush2.msra.mxu0 0.0
          %914 = vmatprep.subr.mxu0 0.0
          %915 = vmatpush2.msra.mxu0 0.0
          %916 = vmatprep.subr.mxu0 0.0
          %917 = vmatpush2.msra.mxu0 0.0
          %918 = vmatprep.subr.mxu0 0.0
          %919 = vmatpush2.msra.mxu0 0.0
          %920 = vmatprep.subr.mxu0 0.0
          %921 = vmatpush2.msra.mxu0 0.0
          %922 = vmatprep.subr.mxu0 0.0
          %923 = vmatpush2.msra.mxu0 0.0
          %924 = vmatprep.subr.mxu0 0.0
          %925 = vmatpush2.msra.mxu0 0.0
          %926 = vmatprep.subr.mxu0 0.0
          %927 = vmatpush2.msra.mxu0 0.0
          %928 = vmatprep.subr.mxu0 0.0
          %929 = vmatpush2.msra.mxu0 0.0
          %930 = vmatprep.subr.mxu0 0.0
          %931 = vmatpush2.msra.mxu0 0.0
          %932 = vmatprep.subr.mxu0 0.0
          %933 = vmatpush2.msra.mxu0 0.0
          %934 = vmatprep.mubr.f32.mxu0 0.0
          %935 = vmatmul.mubr.f32.gmra.mxu0 %v850
          %v936 = vpop.f32.mrf.mxu0
          %v937 = vadd.f32 0.0, %v936
          %v938 = vpop.f32.mrf.mxu0
          %v939 = vadd.f32 0.0, %v938
          %940 = vmatprep.mubr.f32.mxu0 0.0
          %941 = vmatmul.mubr.f32.gmra.mxu0 %v853
          %v942 = vpop.f32.mrf.mxu0
          %v943 = vadd.f32 0.0, %v942
          %v944 = vpop.f32.mrf.mxu0
          %v945 = vadd.f32 0.0, %v944
          %946 = vmatprep.mubr.f32.mxu0 0.0
          %947 = vmatmul.mubr.f32.gmra.mxu0 %v856
          %v948 = vpop.f32.mrf.mxu0
          %v949 = vadd.f32 0.0, %v948
          %v950 = vpop.f32.mrf.mxu0
          %v951 = vadd.f32 0.0, %v950
          %952 = vdwg.mxu0
          %953 = vmatprep.subr.mxu0 0.0
          %954 = vmatpush1.msra.mxu0 0.0
          %955 = vmatprep.subr.mxu0 0.0
          %956 = vmatpush1.msra.mxu0 0.0
          %957 = vmatprep.subr.mxu0 0.0
          %958 = vmatpush1.msra.mxu0 0.0
          %959 = vmatprep.subr.mxu0 0.0
          %960 = vmatpush1.msra.mxu0 0.0
          %961 = vmatprep.subr.mxu0 0.0
          %962 = vmatpush1.msra.mxu0 0.0
          %963 = vmatprep.subr.mxu0 0.0
          %964 = vmatpush1.msra.mxu0 0.0
          %965 = vmatprep.subr.mxu0 0.0
          %966 = vmatpush1.msra.mxu0 0.0
          %967 = vmatprep.subr.mxu0 0.0
          %968 = vmatpush1.msra.mxu0 0.0
          %969 = vmatprep.subr.mxu0 0.0
          %970 = vmatpush1.msra.mxu0 0.0
          %971 = vmatprep.subr.mxu0 0.0
          %972 = vmatpush1.msra.mxu0 0.0
          %973 = vmatprep.subr.mxu0 0.0
          %974 = vmatpush1.msra.mxu0 0.0
          %975 = vmatprep.subr.mxu0 0.0
          %976 = vmatpush1.msra.mxu0 0.0
          %977 = vmatprep.subr.mxu0 0.0
          %978 = vmatpush1.msra.mxu0 0.0
          %979 = vmatprep.subr.mxu0 %v868
          %980 = vmatpush1.msra.mxu0 %v865
          %981 = vmatprep.subr.mxu0 %v836
          %982 = vmatpush1.msra.mxu0 %v834
          %983 = vmatprep.subr.mxu0 %v828
          %984 = vmatpush1.msra.mxu0 %v826
          %985 = vmatprep.subr.mxu0 0.0
          %986 = vmatpush2.msra.mxu0 0.0
          %987 = vmatprep.subr.mxu0 0.0
          %988 = vmatpush2.msra.mxu0 0.0
          %989 = vmatprep.subr.mxu0 0.0
          %990 = vmatpush2.msra.mxu0 0.0
          %991 = vmatprep.subr.mxu0 0.0
          %992 = vmatpush2.msra.mxu0 0.0
          %993 = vmatprep.subr.mxu0 0.0
          %994 = vmatpush2.msra.mxu0 0.0
          %995 = vmatprep.subr.mxu0 0.0
          %996 = vmatpush2.msra.mxu0 0.0
          %997 = vmatprep.subr.mxu0 0.0
          %998 = vmatpush2.msra.mxu0 0.0
          %999 = vmatprep.subr.mxu0 0.0
          %1000 = vmatpush2.msra.mxu0 0.0
          %1001 = vmatprep.subr.mxu0 0.0
          %1002 = vmatpush2.msra.mxu0 0.0
          %1003 = vmatprep.subr.mxu0 0.0
          %1004 = vmatpush2.msra.mxu0 0.0
          %1005 = vmatprep.subr.mxu0 0.0
          %1006 = vmatpush2.msra.mxu0 0.0
          %1007 = vmatprep.subr.mxu0 0.0
          %1008 = vmatpush2.msra.mxu0 0.0
          %1009 = vmatprep.subr.mxu0 0.0
          %1010 = vmatpush2.msra.mxu0 0.0
          %1011 = vmatprep.subr.mxu0 0.0
          %1012 = vmatpush2.msra.mxu0 0.0
          %1013 = vmatprep.subr.mxu0 0.0
          %1014 = vmatpush2.msra.mxu0 0.0
          %1015 = vmatprep.subr.mxu0 0.0
          %1016 = vmatpush2.msra.mxu0 0.0
          %1017 = vmatprep.mubr.f32.mxu0 0.0
          %1018 = vmatmul.mubr.f32.gmra.mxu0 %v850
          %v1019 = vpop.f32.mrf.mxu0
          %v1020 = vadd.f32 0.0, %v1019
          %v1021 = vpop.f32.mrf.mxu0
          %v1022 = vadd.f32 0.0, %v1021
          %1023 = vmatprep.mubr.f32.mxu0 0.0
          %1024 = vmatmul.mubr.f32.gmra.mxu0 %v853
          %v1025 = vpop.f32.mrf.mxu0
          %v1026 = vadd.f32 0.0, %v1025
          %v1027 = vpop.f32.mrf.mxu0
          %v1028 = vadd.f32 0.0, %v1027
          %1029 = vmatprep.mubr.f32.mxu0 0.0
          %1030 = vmatmul.mubr.f32.gmra.mxu0 %v856
          %v1031 = vpop.f32.mrf.mxu0
          %v1032 = vadd.f32 0.0, %v1031
          %v1033 = vpop.f32.mrf.mxu0
          %v1034 = vadd.f32 0.0, %v1033
          %1035 = vdwg.mxu0
          %v1036 = vrcp.pop %v949
          %v1037 = vrcp.pop %v951
          %v1038 = vrcp.pop %v1032
          %v1039 = vrcp.pop %v1034
          %v1040 = vmul.f32 %v949, %v1036
          %v1041 = vmul.f32 %v951, %v1037
          %v1042 = vmul.f32 %v1032, %v1038
          %v1043 = vmul.f32 %v1034, %v1039
          %v1044 = vsub.f32 2.0, %v1040
          %v1045 = vsub.f32 2.0, %v1041
          %v1046 = vsub.f32 2.0, %v1042
          %v1047 = vsub.f32 2.0, %v1043
          %v1048 = vmul.f32 %v1036, %v1044
          %v1049 = vmul.f32 %v1037, %v1045
          %v1050 = vmul.f32 %v1038, %v1046
          %v1051 = vmul.f32 %v1039, %v1047
          %v1052 = vlaneseq
          %v1053 = vshrl.u32 %v1052, 7
          %v1054 = vsub.s32 4, %v1053
          %v1055 = vrot.slane %v1048, %v1054
          %v1056 = vlaneseq
          %v1057 = vshrl.u32 %v1056, 7
          %v1058 = vsub.s32 4, %v1057
          %v1059 = vrot.slane %v1049, %v1058
          %v1060 = vlaneseq
          %v1061 = vshrl.u32 %v1060, 7
          %v1062 = vsub.s32 4, %v1061
          %v1063 = vrot.slane %v1050, %v1062
          %v1064 = vlaneseq
          %v1065 = vshrl.u32 %v1064, 7
          %v1066 = vsub.s32 4, %v1065
          %v1067 = vrot.slane %v1051, %v1066
          %v1068 = vmul.f32 %v937, %v1055
          %v1069 = vmul.f32 %v939, %v1059
          %v1070 = vmul.f32 %v1020, %v1063
          %v1071 = vmul.f32 %v1022, %v1067
          %v1072 = vmul.f32 %v943, %v1055
          %v1073 = vmul.f32 %v945, %v1059
          %v1074 = vmul.f32 %v1026, %v1063
          %v1075 = vmul.f32 %v1028, %v1067
          %v1076 = vmul.f32 %v949, %v1055
          %v1077 = vmul.f32 %v951, %v1059
          %v1078 = vmul.f32 %v1032, %v1063
          %v1079 = vmul.f32 %v1034, %v1067
          %v1080 = vmul.f32 %v1068, 1.442695
          %v1081 = vpow.pop %v1080
          %v1082 = vmul.f32 %v1069, 1.442695
          %v1083 = vpow.pop %v1082
          %v1084 = vmul.f32 %v1070, 1.442695
          %v1085 = vpow.pop %v1084
          %v1086 = vmul.f32 %v1071, 1.442695
          %v1087 = vpow.pop %v1086
          %v1088 = vmul.f32 %v1072, 1.442695
          %v1089 = vpow.pop %v1088
          %v1090 = vmul.f32 %v1073, 1.442695
          %v1091 = vpow.pop %v1090
          %v1092 = vmul.f32 %v1074, 1.442695
          %v1093 = vpow.pop %v1092
          %v1094 = vmul.f32 %v1075, 1.442695
          %v1095 = vpow.pop %v1094
          %v1096 = vmul.f32 %v1076, 1.442695
          %v1097 = vpow.pop %v1096
          %v1098 = vmul.f32 %v1077, 1.442695
          %v1099 = vpow.pop %v1098
          %v1100 = vmul.f32 %v1078, 1.442695
          %v1101 = vpow.pop %v1100
          %v1102 = vmul.f32 %v1079, 1.442695
          %v1103 = vpow.pop %v1102
          %s1104 = scalar_lea.vmem [#allocation2], 72
          %v1105 = vld [vmem:[%s1104] sm:$0xff]
          %v1106 = vld [vmem:[%s1104 + $0x8] sm:$0xff]
          %v1107 = vld [vmem:[%s1104 + $0x10] sm:$0x1f]
          %v1109 = vsel %vm329, %v1105, 0
          %v1112 = vsel %vm329, %v1106, 0
          %v1115 = vsel %vm329, %v1107, 0
          %v1118 = vsel %vm339, %v1097, 0
          %v1121 = vsel %vm339, %v1099, 0
          %v1124 = vsel %vm339, %v1101, 0
          %v1127 = vsel %vm339, %v1103, 0
          %1129 = vmatprep.subr.mxu0 0.0
          %1130 = vmatpush1.msra.mxu0 0.0
          %1131 = vmatprep.subr.mxu0 0.0
          %1132 = vmatpush1.msra.mxu0 0.0
          %1133 = vmatprep.subr.mxu0 0.0
          %1134 = vmatpush1.msra.mxu0 0.0
          %1135 = vmatprep.subr.mxu0 0.0
          %1136 = vmatpush1.msra.mxu0 0.0
          %1137 = vmatprep.subr.mxu0 0.0
          %1138 = vmatpush1.msra.mxu0 0.0
          %1139 = vmatprep.subr.mxu0 0.0
          %1140 = vmatpush1.msra.mxu0 0.0
          %1141 = vmatprep.subr.mxu0 0.0
          %1142 = vmatpush1.msra.mxu0 0.0
          %1143 = vmatprep.subr.mxu0 0.0
          %1144 = vmatpush1.msra.mxu0 0.0
          %1145 = vmatprep.subr.mxu0 0.0
          %1146 = vmatpush1.msra.mxu0 0.0
          %1147 = vmatprep.subr.mxu0 0.0
          %1148 = vmatpush1.msra.mxu0 0.0
          %1149 = vmatprep.subr.mxu0 0.0
          %1150 = vmatpush1.msra.mxu0 0.0
          %1151 = vmatprep.subr.mxu0 0.0
          %1152 = vmatpush1.msra.mxu0 0.0
          %1153 = vmatprep.subr.mxu0 0.0
          %1154 = vmatpush1.msra.mxu0 0.0
          %1155 = vmatprep.subr.mxu0 %v1121
          %1156 = vmatpush1.msra.mxu0 %v1118
          %1157 = vmatprep.subr.mxu0 %v1091
          %1158 = vmatpush1.msra.mxu0 %v1089
          %1159 = vmatprep.subr.mxu0 %v1083
          %1160 = vmatpush1.msra.mxu0 %v1081
          %1161 = vmatprep.subr.mxu0 0.0
          %1162 = vmatpush2.msra.mxu0 0.0
          %1163 = vmatprep.subr.mxu0 0.0
          %1164 = vmatpush2.msra.mxu0 0.0
          %1165 = vmatprep.subr.mxu0 0.0
          %1166 = vmatpush2.msra.mxu0 0.0
          %1167 = vmatprep.subr.mxu0 0.0
          %1168 = vmatpush2.msra.mxu0 0.0
          %1169 = vmatprep.subr.mxu0 0.0
          %1170 = vmatpush2.msra.mxu0 0.0
          %1171 = vmatprep.subr.mxu0 0.0
          %1172 = vmatpush2.msra.mxu0 0.0
          %1173 = vmatprep.subr.mxu0 0.0
          %1174 = vmatpush2.msra.mxu0 0.0
          %1175 = vmatprep.subr.mxu0 0.0
          %1176 = vmatpush2.msra.mxu0 0.0
          %1177 = vmatprep.subr.mxu0 0.0
          %1178 = vmatpush2.msra.mxu0 0.0
          %1179 = vmatprep.subr.mxu0 0.0
          %1180 = vmatpush2.msra.mxu0 0.0
          %1181 = vmatprep.subr.mxu0 0.0
          %1182 = vmatpush2.msra.mxu0 0.0
          %1183 = vmatprep.subr.mxu0 0.0
          %1184 = vmatpush2.msra.mxu0 0.0
          %1185 = vmatprep.subr.mxu0 0.0
          %1186 = vmatpush2.msra.mxu0 0.0
          %1187 = vmatprep.subr.mxu0 0.0
          %1188 = vmatpush2.msra.mxu0 0.0
          %1189 = vmatprep.subr.mxu0 0.0
          %1190 = vmatpush2.msra.mxu0 0.0
          %1191 = vmatprep.subr.mxu0 0.0
          %1192 = vmatpush2.msra.mxu0 0.0
          %1193 = vmatprep.mubr.f32.mxu0 0.0
          %1194 = vmatmul.mubr.f32.gmra.mxu0 %v1109
          %v1195 = vpop.f32.mrf.mxu0
          %v1196 = vadd.f32 0.0, %v1195
          %v1197 = vpop.f32.mrf.mxu0
          %v1198 = vadd.f32 0.0, %v1197
          %1199 = vmatprep.mubr.f32.mxu0 0.0
          %1200 = vmatmul.mubr.f32.gmra.mxu0 %v1112
          %v1201 = vpop.f32.mrf.mxu0
          %v1202 = vadd.f32 0.0, %v1201
          %v1203 = vpop.f32.mrf.mxu0
          %v1204 = vadd.f32 0.0, %v1203
          %1205 = vmatprep.mubr.f32.mxu0 0.0
          %1206 = vmatmul.mubr.f32.gmra.mxu0 %v1115
          %v1207 = vpop.f32.mrf.mxu0
          %v1208 = vadd.f32 0.0, %v1207
          %v1209 = vpop.f32.mrf.mxu0
          %v1210 = vadd.f32 0.0, %v1209
          %1211 = vdwg.mxu0
          %1212 = vmatprep.subr.mxu0 0.0
          %1213 = vmatpush1.msra.mxu0 0.0
          %1214 = vmatprep.subr.mxu0 0.0
          %1215 = vmatpush1.msra.mxu0 0.0
          %1216 = vmatprep.subr.mxu0 0.0
          %1217 = vmatpush1.msra.mxu0 0.0
          %1218 = vmatprep.subr.mxu0 0.0
          %1219 = vmatpush1.msra.mxu0 0.0
          %1220 = vmatprep.subr.mxu0 0.0
          %1221 = vmatpush1.msra.mxu0 0.0
          %1222 = vmatprep.subr.mxu0 0.0
          %1223 = vmatpush1.msra.mxu0 0.0
          %1224 = vmatprep.subr.mxu0 0.0
          %1225 = vmatpush1.msra.mxu0 0.0
          %1226 = vmatprep.subr.mxu0 0.0
          %1227 = vmatpush1.msra.mxu0 0.0
          %1228 = vmatprep.subr.mxu0 0.0
          %1229 = vmatpush1.msra.mxu0 0.0
          %1230 = vmatprep.subr.mxu0 0.0
          %1231 = vmatpush1.msra.mxu0 0.0
          %1232 = vmatprep.subr.mxu0 0.0
          %1233 = vmatpush1.msra.mxu0 0.0
          %1234 = vmatprep.subr.mxu0 0.0
          %1235 = vmatpush1.msra.mxu0 0.0
          %1236 = vmatprep.subr.mxu0 0.0
          %1237 = vmatpush1.msra.mxu0 0.0
          %1238 = vmatprep.subr.mxu0 %v1127
          %1239 = vmatpush1.msra.mxu0 %v1124
          %1240 = vmatprep.subr.mxu0 %v1095
          %1241 = vmatpush1.msra.mxu0 %v1093
          %1242 = vmatprep.subr.mxu0 %v1087
          %1243 = vmatpush1.msra.mxu0 %v1085
          %1244 = vmatprep.subr.mxu0 0.0
          %1245 = vmatpush2.msra.mxu0 0.0
          %1246 = vmatprep.subr.mxu0 0.0
          %1247 = vmatpush2.msra.mxu0 0.0
          %1248 = vmatprep.subr.mxu0 0.0
          %1249 = vmatpush2.msra.mxu0 0.0
          %1250 = vmatprep.subr.mxu0 0.0
          %1251 = vmatpush2.msra.mxu0 0.0
          %1252 = vmatprep.subr.mxu0 0.0
          %1253 = vmatpush2.msra.mxu0 0.0
          %1254 = vmatprep.subr.mxu0 0.0
          %1255 = vmatpush2.msra.mxu0 0.0
          %1256 = vmatprep.subr.mxu0 0.0
          %1257 = vmatpush2.msra.mxu0 0.0
          %1258 = vmatprep.subr.mxu0 0.0
          %1259 = vmatpush2.msra.mxu0 0.0
          %1260 = vmatprep.subr.mxu0 0.0
          %1261 = vmatpush2.msra.mxu0 0.0
          %1262 = vmatprep.subr.mxu0 0.0
          %1263 = vmatpush2.msra.mxu0 0.0
          %1264 = vmatprep.subr.mxu0 0.0
          %1265 = vmatpush2.msra.mxu0 0.0
          %1266 = vmatprep.subr.mxu0 0.0
          %1267 = vmatpush2.msra.mxu0 0.0
          %1268 = vmatprep.subr.mxu0 0.0
          %1269 = vmatpush2.msra.mxu0 0.0
          %1270 = vmatprep.subr.mxu0 0.0
          %1271 = vmatpush2.msra.mxu0 0.0
          %1272 = vmatprep.subr.mxu0 0.0
          %1273 = vmatpush2.msra.mxu0 0.0
          %1274 = vmatprep.subr.mxu0 0.0
          %1275 = vmatpush2.msra.mxu0 0.0
          %1276 = vmatprep.mubr.f32.mxu0 0.0
          %1277 = vmatmul.mubr.f32.gmra.mxu0 %v1109
          %v1278 = vpop.f32.mrf.mxu0
          %v1279 = vadd.f32 0.0, %v1278
          %v1280 = vpop.f32.mrf.mxu0
          %v1281 = vadd.f32 0.0, %v1280
          %1282 = vmatprep.mubr.f32.mxu0 0.0
          %1283 = vmatmul.mubr.f32.gmra.mxu0 %v1112
          %v1284 = vpop.f32.mrf.mxu0
          %v1285 = vadd.f32 0.0, %v1284
          %v1286 = vpop.f32.mrf.mxu0
          %v1287 = vadd.f32 0.0, %v1286
          %1288 = vmatprep.mubr.f32.mxu0 0.0
          %1289 = vmatmul.mubr.f32.gmra.mxu0 %v1115
          %v1290 = vpop.f32.mrf.mxu0
          %v1291 = vadd.f32 0.0, %v1290
          %v1292 = vpop.f32.mrf.mxu0
          %v1293 = vadd.f32 0.0, %v1292
          %1294 = vdwg.mxu0
          %v1295 = vrcp.pop %v1208
          %v1296 = vrcp.pop %v1210
          %v1297 = vrcp.pop %v1291
          %v1298 = vrcp.pop %v1293
          %v1299 = vmul.f32 %v1208, %v1295
          %v1300 = vmul.f32 %v1210, %v1296
          %v1301 = vmul.f32 %v1291, %v1297
          %v1302 = vmul.f32 %v1293, %v1298
          %v1303 = vsub.f32 2.0, %v1299
          %v1304 = vsub.f32 2.0, %v1300
          %v1305 = vsub.f32 2.0, %v1301
          %v1306 = vsub.f32 2.0, %v1302
          %v1307 = vmul.f32 %v1295, %v1303
          %v1308 = vmul.f32 %v1296, %v1304
          %v1309 = vmul.f32 %v1297, %v1305
          %v1310 = vmul.f32 %v1298, %v1306
          %v1311 = vlaneseq
          %v1312 = vshrl.u32 %v1311, 7
          %v1313 = vsub.s32 4, %v1312
          %v1314 = vrot.slane %v1307, %v1313
          %v1315 = vlaneseq
          %v1316 = vshrl.u32 %v1315, 7
          %v1317 = vsub.s32 4, %v1316
          %v1318 = vrot.slane %v1308, %v1317
          %v1319 = vlaneseq
          %v1320 = vshrl.u32 %v1319, 7
          %v1321 = vsub.s32 4, %v1320
          %v1322 = vrot.slane %v1309, %v1321
          %v1323 = vlaneseq
          %v1324 = vshrl.u32 %v1323, 7
          %v1325 = vsub.s32 4, %v1324
          %v1326 = vrot.slane %v1310, %v1325
          %v1327 = vmul.f32 %v1196, %v1314
          %v1328 = vmul.f32 %v1198, %v1318
          %v1329 = vmul.f32 %v1279, %v1322
          %v1330 = vmul.f32 %v1281, %v1326
          %v1331 = vmul.f32 %v1202, %v1314
          %v1332 = vmul.f32 %v1204, %v1318
          %v1333 = vmul.f32 %v1285, %v1322
          %v1334 = vmul.f32 %v1287, %v1326
          %v1335 = vmul.f32 %v1208, %v1314
          %v1336 = vmul.f32 %v1210, %v1318
          %v1337 = vmul.f32 %v1291, %v1322
          %v1338 = vmul.f32 %v1293, %v1326
          %v1339 = vmul.f32 %v1327, 1.442695
          %v1340 = vpow.pop %v1339
          %v1341 = vmul.f32 %v1328, 1.442695
          %v1342 = vpow.pop %v1341
          %v1343 = vmul.f32 %v1329, 1.442695
          %v1344 = vpow.pop %v1343
          %v1345 = vmul.f32 %v1330, 1.442695
          %v1346 = vpow.pop %v1345
          %v1347 = vmul.f32 %v1331, 1.442695
          %v1348 = vpow.pop %v1347
          %v1349 = vmul.f32 %v1332, 1.442695
          %v1350 = vpow.pop %v1349
          %v1351 = vmul.f32 %v1333, 1.442695
          %v1352 = vpow.pop %v1351
          %v1353 = vmul.f32 %v1334, 1.442695
          %v1354 = vpow.pop %v1353
          %v1355 = vmul.f32 %v1335, 1.442695
          %v1356 = vpow.pop %v1355
          %v1357 = vmul.f32 %v1336, 1.442695
          %v1358 = vpow.pop %v1357
          %v1359 = vmul.f32 %v1337, 1.442695
          %v1360 = vpow.pop %v1359
          %v1361 = vmul.f32 %v1338, 1.442695
          %v1362 = vpow.pop %v1361
          %s1363 = scalar_lea.vmem [#allocation2], 96
          %v1364 = vld [vmem:[%s1363] sm:$0xff]
          %v1365 = vld [vmem:[%s1363 + $0x8] sm:$0xff]
          %v1366 = vld [vmem:[%s1363 + $0x10] sm:$0x1f]
          %v1368 = vsel %vm329, %v1364, 0
          %v1371 = vsel %vm329, %v1365, 0
          %v1374 = vsel %vm329, %v1366, 0
          %v1377 = vsel %vm339, %v1356, 0
          %v1380 = vsel %vm339, %v1358, 0
          %v1383 = vsel %vm339, %v1360, 0
          %v1386 = vsel %vm339, %v1362, 0
          %1388 = vmatprep.subr.mxu0 0.0
          %1389 = vmatpush1.msra.mxu0 0.0
          %1390 = vmatprep.subr.mxu0 0.0
          %1391 = vmatpush1.msra.mxu0 0.0
          %1392 = vmatprep.subr.mxu0 0.0
          %1393 = vmatpush1.msra.mxu0 0.0
          %1394 = vmatprep.subr.mxu0 0.0
          %1395 = vmatpush1.msra.mxu0 0.0
          %1396 = vmatprep.subr.mxu0 0.0
          %1397 = vmatpush1.msra.mxu0 0.0
          %1398 = vmatprep.subr.mxu0 0.0
          %1399 = vmatpush1.msra.mxu0 0.0
          %1400 = vmatprep.subr.mxu0 0.0
          %1401 = vmatpush1.msra.mxu0 0.0
          %1402 = vmatprep.subr.mxu0 0.0
          %1403 = vmatpush1.msra.mxu0 0.0
          %1404 = vmatprep.subr.mxu0 0.0
          %1405 = vmatpush1.msra.mxu0 0.0
          %1406 = vmatprep.subr.mxu0 0.0
          %1407 = vmatpush1.msra.mxu0 0.0
          %1408 = vmatprep.subr.mxu0 0.0
          %1409 = vmatpush1.msra.mxu0 0.0
          %1410 = vmatprep.subr.mxu0 0.0
          %1411 = vmatpush1.msra.mxu0 0.0
          %1412 = vmatprep.subr.mxu0 0.0
          %1413 = vmatpush1.msra.mxu0 0.0
          %1414 = vmatprep.subr.mxu0 %v1380
          %1415 = vmatpush1.msra.mxu0 %v1377
          %1416 = vmatprep.subr.mxu0 %v1350
          %1417 = vmatpush1.msra.mxu0 %v1348
          %1418 = vmatprep.subr.mxu0 %v1342
          %1419 = vmatpush1.msra.mxu0 %v1340
          %1420 = vmatprep.subr.mxu0 0.0
          %1421 = vmatpush2.msra.mxu0 0.0
          %1422 = vmatprep.subr.mxu0 0.0
          %1423 = vmatpush2.msra.mxu0 0.0
          %1424 = vmatprep.subr.mxu0 0.0
          %1425 = vmatpush2.msra.mxu0 0.0
          %1426 = vmatprep.subr.mxu0 0.0
          %1427 = vmatpush2.msra.mxu0 0.0
          %1428 = vmatprep.subr.mxu0 0.0
          %1429 = vmatpush2.msra.mxu0 0.0
          %1430 = vmatprep.subr.mxu0 0.0
          %1431 = vmatpush2.msra.mxu0 0.0
          %1432 = vmatprep.subr.mxu0 0.0
          %1433 = vmatpush2.msra.mxu0 0.0
          %1434 = vmatprep.subr.mxu0 0.0
          %1435 = vmatpush2.msra.mxu0 0.0
          %1436 = vmatprep.subr.mxu0 0.0
          %1437 = vmatpush2.msra.mxu0 0.0
          %1438 = vmatprep.subr.mxu0 0.0
          %1439 = vmatpush2.msra.mxu0 0.0
          %1440 = vmatprep.subr.mxu0 0.0
          %1441 = vmatpush2.msra.mxu0 0.0
          %1442 = vmatprep.subr.mxu0 0.0
          %1443 = vmatpush2.msra.mxu0 0.0
          %1444 = vmatprep.subr.mxu0 0.0
          %1445 = vmatpush2.msra.mxu0 0.0
          %1446 = vmatprep.subr.mxu0 0.0
          %1447 = vmatpush2.msra.mxu0 0.0
          %1448 = vmatprep.subr.mxu0 0.0
          %1449 = vmatpush2.msra.mxu0 0.0
          %1450 = vmatprep.subr.mxu0 0.0
          %1451 = vmatpush2.msra.mxu0 0.0
          %1452 = vmatprep.mubr.f32.mxu0 0.0
          %1453 = vmatmul.mubr.f32.gmra.mxu0 %v1368
          %v1454 = vpop.f32.mrf.mxu0
          %v1455 = vadd.f32 0.0, %v1454
          %v1456 = vpop.f32.mrf.mxu0
          %v1457 = vadd.f32 0.0, %v1456
          %1458 = vmatprep.mubr.f32.mxu0 0.0
          %1459 = vmatmul.mubr.f32.gmra.mxu0 %v1371
          %v1460 = vpop.f32.mrf.mxu0
          %v1461 = vadd.f32 0.0, %v1460
          %v1462 = vpop.f32.mrf.mxu0
          %v1463 = vadd.f32 0.0, %v1462
          %1464 = vmatprep.mubr.f32.mxu0 0.0
          %1465 = vmatmul.mubr.f32.gmra.mxu0 %v1374
          %v1466 = vpop.f32.mrf.mxu0
          %v1467 = vadd.f32 0.0, %v1466
          %v1468 = vpop.f32.mrf.mxu0
          %v1469 = vadd.f32 0.0, %v1468
          %1470 = vdwg.mxu0
          %1471 = vmatprep.subr.mxu0 0.0
          %1472 = vmatpush1.msra.mxu0 0.0
          %1473 = vmatprep.subr.mxu0 0.0
          %1474 = vmatpush1.msra.mxu0 0.0
          %1475 = vmatprep.subr.mxu0 0.0
          %1476 = vmatpush1.msra.mxu0 0.0
          %1477 = vmatprep.subr.mxu0 0.0
          %1478 = vmatpush1.msra.mxu0 0.0
          %1479 = vmatprep.subr.mxu0 0.0
          %1480 = vmatpush1.msra.mxu0 0.0
          %1481 = vmatprep.subr.mxu0 0.0
          %1482 = vmatpush1.msra.mxu0 0.0
          %1483 = vmatprep.subr.mxu0 0.0
          %1484 = vmatpush1.msra.mxu0 0.0
          %1485 = vmatprep.subr.mxu0 0.0
          %1486 = vmatpush1.msra.mxu0 0.0
          %1487 = vmatprep.subr.mxu0 0.0
          %1488 = vmatpush1.msra.mxu0 0.0
          %1489 = vmatprep.subr.mxu0 0.0
          %1490 = vmatpush1.msra.mxu0 0.0
          %1491 = vmatprep.subr.mxu0 0.0
          %1492 = vmatpush1.msra.mxu0 0.0
          %1493 = vmatprep.subr.mxu0 0.0
          %1494 = vmatpush1.msra.mxu0 0.0
          %1495 = vmatprep.subr.mxu0 0.0
          %1496 = vmatpush1.msra.mxu0 0.0
          %1497 = vmatprep.subr.mxu0 %v1386
          %1498 = vmatpush1.msra.mxu0 %v1383
          %1499 = vmatprep.subr.mxu0 %v1354
          %1500 = vmatpush1.msra.mxu0 %v1352
          %1501 = vmatprep.subr.mxu0 %v1346
          %1502 = vmatpush1.msra.mxu0 %v1344
          %1503 = vmatprep.subr.mxu0 0.0
          %1504 = vmatpush2.msra.mxu0 0.0
          %1505 = vmatprep.subr.mxu0 0.0
          %1506 = vmatpush2.msra.mxu0 0.0
          %1507 = vmatprep.subr.mxu0 0.0
          %1508 = vmatpush2.msra.mxu0 0.0
          %1509 = vmatprep.subr.mxu0 0.0
          %1510 = vmatpush2.msra.mxu0 0.0
          %1511 = vmatprep.subr.mxu0 0.0
          %1512 = vmatpush2.msra.mxu0 0.0
          %1513 = vmatprep.subr.mxu0 0.0
          %1514 = vmatpush2.msra.mxu0 0.0
          %1515 = vmatprep.subr.mxu0 0.0
          %1516 = vmatpush2.msra.mxu0 0.0
          %1517 = vmatprep.subr.mxu0 0.0
          %1518 = vmatpush2.msra.mxu0 0.0
          %1519 = vmatprep.subr.mxu0 0.0
          %1520 = vmatpush2.msra.mxu0 0.0
          %1521 = vmatprep.subr.mxu0 0.0
          %1522 = vmatpush2.msra.mxu0 0.0
          %1523 = vmatprep.subr.mxu0 0.0
          %1524 = vmatpush2.msra.mxu0 0.0
          %1525 = vmatprep.subr.mxu0 0.0
          %1526 = vmatpush2.msra.mxu0 0.0
          %1527 = vmatprep.subr.mxu0 0.0
          %1528 = vmatpush2.msra.mxu0 0.0
          %1529 = vmatprep.subr.mxu0 0.0
          %1530 = vmatpush2.msra.mxu0 0.0
          %1531 = vmatprep.subr.mxu0 0.0
          %1532 = vmatpush2.msra.mxu0 0.0
          %1533 = vmatprep.subr.mxu0 0.0
          %1534 = vmatpush2.msra.mxu0 0.0
          %1535 = vmatprep.mubr.f32.mxu0 0.0
          %1536 = vmatmul.mubr.f32.gmra.mxu0 %v1368
          %v1537 = vpop.f32.mrf.mxu0
          %v1538 = vadd.f32 0.0, %v1537
          %v1539 = vpop.f32.mrf.mxu0
          %v1540 = vadd.f32 0.0, %v1539
          %1541 = vmatprep.mubr.f32.mxu0 0.0
          %1542 = vmatmul.mubr.f32.gmra.mxu0 %v1371
          %v1543 = vpop.f32.mrf.mxu0
          %v1544 = vadd.f32 0.0, %v1543
          %v1545 = vpop.f32.mrf.mxu0
          %v1546 = vadd.f32 0.0, %v1545
          %1547 = vmatprep.mubr.f32.mxu0 0.0
          %1548 = vmatmul.mubr.f32.gmra.mxu0 %v1374
          %v1549 = vpop.f32.mrf.mxu0
          %v1550 = vadd.f32 0.0, %v1549
          %v1551 = vpop.f32.mrf.mxu0
          %v1552 = vadd.f32 0.0, %v1551
          %1553 = vdwg.mxu0
          %v1554 = vrcp.pop %v1467
          %v1555 = vrcp.pop %v1469
          %v1556 = vrcp.pop %v1550
          %v1557 = vrcp.pop %v1552
          %v1558 = vmul.f32 %v1467, %v1554
          %v1559 = vmul.f32 %v1469, %v1555
          %v1560 = vmul.f32 %v1550, %v1556
          %v1561 = vmul.f32 %v1552, %v1557
          %v1562 = vsub.f32 2.0, %v1558
          %v1563 = vsub.f32 2.0, %v1559
          %v1564 = vsub.f32 2.0, %v1560
          %v1565 = vsub.f32 2.0, %v1561
          %v1566 = vmul.f32 %v1554, %v1562
          %v1567 = vmul.f32 %v1555, %v1563
          %v1568 = vmul.f32 %v1556, %v1564
          %v1569 = vmul.f32 %v1557, %v1565
          %v1570 = vlaneseq
          %v1571 = vshrl.u32 %v1570, 7
          %v1572 = vsub.s32 4, %v1571
          %v1573 = vrot.slane %v1566, %v1572
          %v1574 = vlaneseq
          %v1575 = vshrl.u32 %v1574, 7
          %v1576 = vsub.s32 4, %v1575
          %v1577 = vrot.slane %v1567, %v1576
          %v1578 = vlaneseq
          %v1579 = vshrl.u32 %v1578, 7
          %v1580 = vsub.s32 4, %v1579
          %v1581 = vrot.slane %v1568, %v1580
          %v1582 = vlaneseq
          %v1583 = vshrl.u32 %v1582, 7
          %v1584 = vsub.s32 4, %v1583
          %v1585 = vrot.slane %v1569, %v1584
          %v1586 = vmul.f32 %v1455, %v1573
          %v1587 = vmul.f32 %v1457, %v1577
          %v1588 = vmul.f32 %v1538, %v1581
          %v1589 = vmul.f32 %v1540, %v1585
          %v1590 = vmul.f32 %v1461, %v1573
          %v1591 = vmul.f32 %v1463, %v1577
          %v1592 = vmul.f32 %v1544, %v1581
          %v1593 = vmul.f32 %v1546, %v1585
          %v1594 = vmul.f32 %v1467, %v1573
          %v1595 = vmul.f32 %v1469, %v1577
          %v1596 = vmul.f32 %v1550, %v1581
          %v1597 = vmul.f32 %v1552, %v1585
          %v1598 = vmul.f32 %v1586, 1.442695
          %v1599 = vpow.pop %v1598
          %v1600 = vmul.f32 %v1587, 1.442695
          %v1601 = vpow.pop %v1600
          %v1602 = vmul.f32 %v1588, 1.442695
          %v1603 = vpow.pop %v1602
          %v1604 = vmul.f32 %v1589, 1.442695
          %v1605 = vpow.pop %v1604
          %v1606 = vmul.f32 %v1590, 1.442695
          %v1607 = vpow.pop %v1606
          %v1608 = vmul.f32 %v1591, 1.442695
          %v1609 = vpow.pop %v1608
          %v1610 = vmul.f32 %v1592, 1.442695
          %v1611 = vpow.pop %v1610
          %v1612 = vmul.f32 %v1593, 1.442695
          %v1613 = vpow.pop %v1612
          %v1614 = vmul.f32 %v1594, 1.442695
          %v1615 = vpow.pop %v1614
          %v1616 = vmul.f32 %v1595, 1.442695
          %v1617 = vpow.pop %v1616
          %v1618 = vmul.f32 %v1596, 1.442695
          %v1619 = vpow.pop %v1618
          %v1620 = vmul.f32 %v1597, 1.442695
          %v1621 = vpow.pop %v1620
          %s1622 = scalar_lea.vmem [#allocation2], 120
          %v1623 = vld [vmem:[%s1622] sm:$0xff]
          %v1624 = vld [vmem:[%s1622 + $0x8] sm:$0xff]
          %v1625 = vld [vmem:[%s1622 + $0x10] sm:$0x1f]
          %v1627 = vsel %vm329, %v1623, 0
          %v1630 = vsel %vm329, %v1624, 0
          %v1633 = vsel %vm329, %v1625, 0
          %v1636 = vsel %vm339, %v1615, 0
          %v1639 = vsel %vm339, %v1617, 0
          %v1642 = vsel %vm339, %v1619, 0
          %v1645 = vsel %vm339, %v1621, 0
          %1647 = vmatprep.subr.mxu0 0.0
          %1648 = vmatpush1.msra.mxu0 0.0
          %1649 = vmatprep.subr.mxu0 0.0
          %1650 = vmatpush1.msra.mxu0 0.0
          %1651 = vmatprep.subr.mxu0 0.0
          %1652 = vmatpush1.msra.mxu0 0.0
          %1653 = vmatprep.subr.mxu0 0.0
          %1654 = vmatpush1.msra.mxu0 0.0
          %1655 = vmatprep.subr.mxu0 0.0
          %1656 = vmatpush1.msra.mxu0 0.0
          %1657 = vmatprep.subr.mxu0 0.0
          %1658 = vmatpush1.msra.mxu0 0.0
          %1659 = vmatprep.subr.mxu0 0.0
          %1660 = vmatpush1.msra.mxu0 0.0
          %1661 = vmatprep.subr.mxu0 0.0
          %1662 = vmatpush1.msra.mxu0 0.0
          %1663 = vmatprep.subr.mxu0 0.0
          %1664 = vmatpush1.msra.mxu0 0.0
          %1665 = vmatprep.subr.mxu0 0.0
          %1666 = vmatpush1.msra.mxu0 0.0
          %1667 = vmatprep.subr.mxu0 0.0
          %1668 = vmatpush1.msra.mxu0 0.0
          %1669 = vmatprep.subr.mxu0 0.0
          %1670 = vmatpush1.msra.mxu0 0.0
          %1671 = vmatprep.subr.mxu0 0.0
          %1672 = vmatpush1.msra.mxu0 0.0
          %1673 = vmatprep.subr.mxu0 %v1639
          %1674 = vmatpush1.msra.mxu0 %v1636
          %1675 = vmatprep.subr.mxu0 %v1609
          %1676 = vmatpush1.msra.mxu0 %v1607
          %1677 = vmatprep.subr.mxu0 %v1601
          %1678 = vmatpush1.msra.mxu0 %v1599
          %1679 = vmatprep.subr.mxu0 0.0
          %1680 = vmatpush2.msra.mxu0 0.0
          %1681 = vmatprep.subr.mxu0 0.0
          %1682 = vmatpush2.msra.mxu0 0.0
          %1683 = vmatprep.subr.mxu0 0.0
          %1684 = vmatpush2.msra.mxu0 0.0
          %1685 = vmatprep.subr.mxu0 0.0
          %1686 = vmatpush2.msra.mxu0 0.0
          %1687 = vmatprep.subr.mxu0 0.0
          %1688 = vmatpush2.msra.mxu0 0.0
          %1689 = vmatprep.subr.mxu0 0.0
          %1690 = vmatpush2.msra.mxu0 0.0
          %1691 = vmatprep.subr.mxu0 0.0
          %1692 = vmatpush2.msra.mxu0 0.0
          %1693 = vmatprep.subr.mxu0 0.0
          %1694 = vmatpush2.msra.mxu0 0.0
          %1695 = vmatprep.subr.mxu0 0.0
          %1696 = vmatpush2.msra.mxu0 0.0
          %1697 = vmatprep.subr.mxu0 0.0
          %1698 = vmatpush2.msra.mxu0 0.0
          %1699 = vmatprep.subr.mxu0 0.0
          %1700 = vmatpush2.msra.mxu0 0.0
          %1701 = vmatprep.subr.mxu0 0.0
          %1702 = vmatpush2.msra.mxu0 0.0
          %1703 = vmatprep.subr.mxu0 0.0
          %1704 = vmatpush2.msra.mxu0 0.0
          %1705 = vmatprep.subr.mxu0 0.0
          %1706 = vmatpush2.msra.mxu0 0.0
          %1707 = vmatprep.subr.mxu0 0.0
          %1708 = vmatpush2.msra.mxu0 0.0
          %1709 = vmatprep.subr.mxu0 0.0
          %1710 = vmatpush2.msra.mxu0 0.0
          %1711 = vmatprep.mubr.f32.mxu0 0.0
          %1712 = vmatmul.mubr.f32.gmra.mxu0 %v1627
          %v1713 = vpop.f32.mrf.mxu0
          %v1714 = vadd.f32 0.0, %v1713
          %v1715 = vpop.f32.mrf.mxu0
          %v1716 = vadd.f32 0.0, %v1715
          %1717 = vmatprep.mubr.f32.mxu0 0.0
          %1718 = vmatmul.mubr.f32.gmra.mxu0 %v1630
          %v1719 = vpop.f32.mrf.mxu0
          %v1720 = vadd.f32 0.0, %v1719
          %v1721 = vpop.f32.mrf.mxu0
          %v1722 = vadd.f32 0.0, %v1721
          %1723 = vmatprep.mubr.f32.mxu0 0.0
          %1724 = vmatmul.mubr.f32.gmra.mxu0 %v1633
          %v1725 = vpop.f32.mrf.mxu0
          %v1726 = vadd.f32 0.0, %v1725
          %v1727 = vpop.f32.mrf.mxu0
          %v1728 = vadd.f32 0.0, %v1727
          %1729 = vdwg.mxu0
          %1730 = vmatprep.subr.mxu0 0.0
          %1731 = vmatpush1.msra.mxu0 0.0
          %1732 = vmatprep.subr.mxu0 0.0
          %1733 = vmatpush1.msra.mxu0 0.0
          %1734 = vmatprep.subr.mxu0 0.0
          %1735 = vmatpush1.msra.mxu0 0.0
          %1736 = vmatprep.subr.mxu0 0.0
          %1737 = vmatpush1.msra.mxu0 0.0
          %1738 = vmatprep.subr.mxu0 0.0
          %1739 = vmatpush1.msra.mxu0 0.0
          %1740 = vmatprep.subr.mxu0 0.0
          %1741 = vmatpush1.msra.mxu0 0.0
          %1742 = vmatprep.subr.mxu0 0.0
          %1743 = vmatpush1.msra.mxu0 0.0
          %1744 = vmatprep.subr.mxu0 0.0
          %1745 = vmatpush1.msra.mxu0 0.0
          %1746 = vmatprep.subr.mxu0 0.0
          %1747 = vmatpush1.msra.mxu0 0.0
          %1748 = vmatprep.subr.mxu0 0.0
          %1749 = vmatpush1.msra.mxu0 0.0
          %1750 = vmatprep.subr.mxu0 0.0
          %1751 = vmatpush1.msra.mxu0 0.0
          %1752 = vmatprep.subr.mxu0 0.0
          %1753 = vmatpush1.msra.mxu0 0.0
          %1754 = vmatprep.subr.mxu0 0.0
          %1755 = vmatpush1.msra.mxu0 0.0
          %1756 = vmatprep.subr.mxu0 %v1645
          %1757 = vmatpush1.msra.mxu0 %v1642
          %1758 = vmatprep.subr.mxu0 %v1613
          %1759 = vmatpush1.msra.mxu0 %v1611
          %1760 = vmatprep.subr.mxu0 %v1605
          %1761 = vmatpush1.msra.mxu0 %v1603
          %1762 = vmatprep.subr.mxu0 0.0
          %1763 = vmatpush2.msra.mxu0 0.0
          %1764 = vmatprep.subr.mxu0 0.0
          %1765 = vmatpush2.msra.mxu0 0.0
          %1766 = vmatprep.subr.mxu0 0.0
          %1767 = vmatpush2.msra.mxu0 0.0
          %1768 = vmatprep.subr.mxu0 0.0
          %1769 = vmatpush2.msra.mxu0 0.0
          %1770 = vmatprep.subr.mxu0 0.0
          %1771 = vmatpush2.msra.mxu0 0.0
          %1772 = vmatprep.subr.mxu0 0.0
          %1773 = vmatpush2.msra.mxu0 0.0
          %1774 = vmatprep.subr.mxu0 0.0
          %1775 = vmatpush2.msra.mxu0 0.0
          %1776 = vmatprep.subr.mxu0 0.0
          %1777 = vmatpush2.msra.mxu0 0.0
          %1778 = vmatprep.subr.mxu0 0.0
          %1779 = vmatpush2.msra.mxu0 0.0
          %1780 = vmatprep.subr.mxu0 0.0
          %1781 = vmatpush2.msra.mxu0 0.0
          %1782 = vmatprep.subr.mxu0 0.0
          %1783 = vmatpush2.msra.mxu0 0.0
          %1784 = vmatprep.subr.mxu0 0.0
          %1785 = vmatpush2.msra.mxu0 0.0
          %1786 = vmatprep.subr.mxu0 0.0
          %1787 = vmatpush2.msra.mxu0 0.0
          %1788 = vmatprep.subr.mxu0 0.0
          %1789 = vmatpush2.msra.mxu0 0.0
          %1790 = vmatprep.subr.mxu0 0.0
          %1791 = vmatpush2.msra.mxu0 0.0
          %1792 = vmatprep.subr.mxu0 0.0
          %1793 = vmatpush2.msra.mxu0 0.0
          %1794 = vmatprep.mubr.f32.mxu0 0.0
          %1795 = vmatmul.mubr.f32.gmra.mxu0 %v1627
          %v1796 = vpop.f32.mrf.mxu0
          %v1797 = vadd.f32 0.0, %v1796
          %v1798 = vpop.f32.mrf.mxu0
          %v1799 = vadd.f32 0.0, %v1798
          %1800 = vmatprep.mubr.f32.mxu0 0.0
          %1801 = vmatmul.mubr.f32.gmra.mxu0 %v1630
          %v1802 = vpop.f32.mrf.mxu0
          %v1803 = vadd.f32 0.0, %v1802
          %v1804 = vpop.f32.mrf.mxu0
          %v1805 = vadd.f32 0.0, %v1804
          %1806 = vmatprep.mubr.f32.mxu0 0.0
          %1807 = vmatmul.mubr.f32.gmra.mxu0 %v1633
          %v1808 = vpop.f32.mrf.mxu0
          %v1809 = vadd.f32 0.0, %v1808
          %v1810 = vpop.f32.mrf.mxu0
          %v1811 = vadd.f32 0.0, %v1810
          %1812 = vdwg.mxu0
          %v1813 = vrcp.pop %v1726
          %v1814 = vrcp.pop %v1728
          %v1815 = vrcp.pop %v1809
          %v1816 = vrcp.pop %v1811
          %v1817 = vmul.f32 %v1726, %v1813
          %v1818 = vmul.f32 %v1728, %v1814
          %v1819 = vmul.f32 %v1809, %v1815
          %v1820 = vmul.f32 %v1811, %v1816
          %v1821 = vsub.f32 2.0, %v1817
          %v1822 = vsub.f32 2.0, %v1818
          %v1823 = vsub.f32 2.0, %v1819
          %v1824 = vsub.f32 2.0, %v1820
          %v1825 = vmul.f32 %v1813, %v1821
          %v1826 = vmul.f32 %v1814, %v1822
          %v1827 = vmul.f32 %v1815, %v1823
          %v1828 = vmul.f32 %v1816, %v1824
          %v1829 = vlaneseq
          %v1830 = vshrl.u32 %v1829, 7
          %v1831 = vsub.s32 4, %v1830
          %v1832 = vrot.slane %v1825, %v1831
          %v1833 = vlaneseq
          %v1834 = vshrl.u32 %v1833, 7
          %v1835 = vsub.s32 4, %v1834
          %v1836 = vrot.slane %v1826, %v1835
          %v1837 = vlaneseq
          %v1838 = vshrl.u32 %v1837, 7
          %v1839 = vsub.s32 4, %v1838
          %v1840 = vrot.slane %v1827, %v1839
          %v1841 = vlaneseq
          %v1842 = vshrl.u32 %v1841, 7
          %v1843 = vsub.s32 4, %v1842
          %v1844 = vrot.slane %v1828, %v1843
          %v1845 = vmul.f32 %v1714, %v1832
          %v1846 = vmul.f32 %v1716, %v1836
          %v1847 = vmul.f32 %v1797, %v1840
          %v1848 = vmul.f32 %v1799, %v1844
          %v1849 = vmul.f32 %v1720, %v1832
          %v1850 = vmul.f32 %v1722, %v1836
          %v1851 = vmul.f32 %v1803, %v1840
          %v1852 = vmul.f32 %v1805, %v1844
          %v1853 = vmul.f32 %v1726, %v1832
          %v1854 = vmul.f32 %v1728, %v1836
          %v1855 = vmul.f32 %v1809, %v1840
          %v1856 = vmul.f32 %v1811, %v1844
          %v1857 = vmul.f32 %v1845, 1.442695
          %v1858 = vpow.pop %v1857
          %v1859 = vmul.f32 %v1846, 1.442695
          %v1860 = vpow.pop %v1859
          %v1861 = vmul.f32 %v1847, 1.442695
          %v1862 = vpow.pop %v1861
          %v1863 = vmul.f32 %v1848, 1.442695
          %v1864 = vpow.pop %v1863
          %v1865 = vmul.f32 %v1849, 1.442695
          %v1866 = vpow.pop %v1865
          %v1867 = vmul.f32 %v1850, 1.442695
          %v1868 = vpow.pop %v1867
          %v1869 = vmul.f32 %v1851, 1.442695
          %v1870 = vpow.pop %v1869
          %v1871 = vmul.f32 %v1852, 1.442695
          %v1872 = vpow.pop %v1871
          %v1873 = vmul.f32 %v1853, 1.442695
          %v1874 = vpow.pop %v1873
          %v1875 = vmul.f32 %v1854, 1.442695
          %v1876 = vpow.pop %v1875
          %v1877 = vmul.f32 %v1855, 1.442695
          %v1878 = vpow.pop %v1877
          %v1879 = vmul.f32 %v1856, 1.442695
          %v1880 = vpow.pop %v1879
          %s1881 = scalar_lea.vmem [#allocation2], 144
          %v1882 = vld [vmem:[%s1881] sm:$0xff]
          %v1883 = vld [vmem:[%s1881 + $0x8] sm:$0xff]
          %v1884 = vld [vmem:[%s1881 + $0x10] sm:$0x1f]
          %v1886 = vsel %vm329, %v1882, 0
          %v1889 = vsel %vm329, %v1883, 0
          %v1892 = vsel %vm329, %v1884, 0
          %v1895 = vsel %vm339, %v1874, 0
          %v1898 = vsel %vm339, %v1876, 0
          %v1901 = vsel %vm339, %v1878, 0
          %v1904 = vsel %vm339, %v1880, 0
          %1906 = vmatprep.subr.mxu0 0.0
          %1907 = vmatpush1.msra.mxu0 0.0
          %1908 = vmatprep.subr.mxu0 0.0
          %1909 = vmatpush1.msra.mxu0 0.0
          %1910 = vmatprep.subr.mxu0 0.0
          %1911 = vmatpush1.msra.mxu0 0.0
          %1912 = vmatprep.subr.mxu0 0.0
          %1913 = vmatpush1.msra.mxu0 0.0
          %1914 = vmatprep.subr.mxu0 0.0
          %1915 = vmatpush1.msra.mxu0 0.0
          %1916 = vmatprep.subr.mxu0 0.0
          %1917 = vmatpush1.msra.mxu0 0.0
          %1918 = vmatprep.subr.mxu0 0.0
          %1919 = vmatpush1.msra.mxu0 0.0
          %1920 = vmatprep.subr.mxu0 0.0
          %1921 = vmatpush1.msra.mxu0 0.0
          %1922 = vmatprep.subr.mxu0 0.0
          %1923 = vmatpush1.msra.mxu0 0.0
          %1924 = vmatprep.subr.mxu0 0.0
          %1925 = vmatpush1.msra.mxu0 0.0
          %1926 = vmatprep.subr.mxu0 0.0
          %1927 = vmatpush1.msra.mxu0 0.0
          %1928 = vmatprep.subr.mxu0 0.0
          %1929 = vmatpush1.msra.mxu0 0.0
          %1930 = vmatprep.subr.mxu0 0.0
          %1931 = vmatpush1.msra.mxu0 0.0
          %1932 = vmatprep.subr.mxu0 %v1898
          %1933 = vmatpush1.msra.mxu0 %v1895
          %1934 = vmatprep.subr.mxu0 %v1868
          %1935 = vmatpush1.msra.mxu0 %v1866
          %1936 = vmatprep.subr.mxu0 %v1860
          %1937 = vmatpush1.msra.mxu0 %v1858
          %1938 = vmatprep.subr.mxu0 0.0
          %1939 = vmatpush2.msra.mxu0 0.0
          %1940 = vmatprep.subr.mxu0 0.0
          %1941 = vmatpush2.msra.mxu0 0.0
          %1942 = vmatprep.subr.mxu0 0.0
          %1943 = vmatpush2.msra.mxu0 0.0
          %1944 = vmatprep.subr.mxu0 0.0
          %1945 = vmatpush2.msra.mxu0 0.0
          %1946 = vmatprep.subr.mxu0 0.0
          %1947 = vmatpush2.msra.mxu0 0.0
          %1948 = vmatprep.subr.mxu0 0.0
          %1949 = vmatpush2.msra.mxu0 0.0
          %1950 = vmatprep.subr.mxu0 0.0
          %1951 = vmatpush2.msra.mxu0 0.0
          %1952 = vmatprep.subr.mxu0 0.0
          %1953 = vmatpush2.msra.mxu0 0.0
          %1954 = vmatprep.subr.mxu0 0.0
          %1955 = vmatpush2.msra.mxu0 0.0
          %1956 = vmatprep.subr.mxu0 0.0
          %1957 = vmatpush2.msra.mxu0 0.0
          %1958 = vmatprep.subr.mxu0 0.0
          %1959 = vmatpush2.msra.mxu0 0.0
          %1960 = vmatprep.subr.mxu0 0.0
          %1961 = vmatpush2.msra.mxu0 0.0
          %1962 = vmatprep.subr.mxu0 0.0
          %1963 = vmatpush2.msra.mxu0 0.0
          %1964 = vmatprep.subr.mxu0 0.0
          %1965 = vmatpush2.msra.mxu0 0.0
          %1966 = vmatprep.subr.mxu0 0.0
          %1967 = vmatpush2.msra.mxu0 0.0
          %1968 = vmatprep.subr.mxu0 0.0
          %1969 = vmatpush2.msra.mxu0 0.0
          %1970 = vmatprep.mubr.f32.mxu0 0.0
          %1971 = vmatmul.mubr.f32.gmra.mxu0 %v1886
          %v1972 = vpop.f32.mrf.mxu0
          %v1973 = vadd.f32 0.0, %v1972
          %v1974 = vpop.f32.mrf.mxu0
          %v1975 = vadd.f32 0.0, %v1974
          %1976 = vmatprep.mubr.f32.mxu0 0.0
          %1977 = vmatmul.mubr.f32.gmra.mxu0 %v1889
          %v1978 = vpop.f32.mrf.mxu0
          %v1979 = vadd.f32 0.0, %v1978
          %v1980 = vpop.f32.mrf.mxu0
          %v1981 = vadd.f32 0.0, %v1980
          %1982 = vmatprep.mubr.f32.mxu0 0.0
          %1983 = vmatmul.mubr.f32.gmra.mxu0 %v1892
          %v1984 = vpop.f32.mrf.mxu0
          %v1985 = vadd.f32 0.0, %v1984
          %v1986 = vpop.f32.mrf.mxu0
          %v1987 = vadd.f32 0.0, %v1986
          %1988 = vdwg.mxu0
          %1989 = vmatprep.subr.mxu0 0.0
          %1990 = vmatpush1.msra.mxu0 0.0
          %1991 = vmatprep.subr.mxu0 0.0
          %1992 = vmatpush1.msra.mxu0 0.0
          %1993 = vmatprep.subr.mxu0 0.0
          %1994 = vmatpush1.msra.mxu0 0.0
          %1995 = vmatprep.subr.mxu0 0.0
          %1996 = vmatpush1.msra.mxu0 0.0
          %1997 = vmatprep.subr.mxu0 0.0
          %1998 = vmatpush1.msra.mxu0 0.0
          %1999 = vmatprep.subr.mxu0 0.0
          %2000 = vmatpush1.msra.mxu0 0.0
          %2001 = vmatprep.subr.mxu0 0.0
          %2002 = vmatpush1.msra.mxu0 0.0
          %2003 = vmatprep.subr.mxu0 0.0
          %2004 = vmatpush1.msra.mxu0 0.0
          %2005 = vmatprep.subr.mxu0 0.0
          %2006 = vmatpush1.msra.mxu0 0.0
          %2007 = vmatprep.subr.mxu0 0.0
          %2008 = vmatpush1.msra.mxu0 0.0
          %2009 = vmatprep.subr.mxu0 0.0
          %2010 = vmatpush1.msra.mxu0 0.0
          %2011 = vmatprep.subr.mxu0 0.0
          %2012 = vmatpush1.msra.mxu0 0.0
          %2013 = vmatprep.subr.mxu0 0.0
          %2014 = vmatpush1.msra.mxu0 0.0
          %2015 = vmatprep.subr.mxu0 %v1904
          %2016 = vmatpush1.msra.mxu0 %v1901
          %2017 = vmatprep.subr.mxu0 %v1872
          %2018 = vmatpush1.msra.mxu0 %v1870
          %2019 = vmatprep.subr.mxu0 %v1864
          %2020 = vmatpush1.msra.mxu0 %v1862
          %2021 = vmatprep.subr.mxu0 0.0
          %2022 = vmatpush2.msra.mxu0 0.0
          %2023 = vmatprep.subr.mxu0 0.0
          %2024 = vmatpush2.msra.mxu0 0.0
          %2025 = vmatprep.subr.mxu0 0.0
          %2026 = vmatpush2.msra.mxu0 0.0
          %2027 = vmatprep.subr.mxu0 0.0
          %2028 = vmatpush2.msra.mxu0 0.0
          %2029 = vmatprep.subr.mxu0 0.0
          %2030 = vmatpush2.msra.mxu0 0.0
          %2031 = vmatprep.subr.mxu0 0.0
          %2032 = vmatpush2.msra.mxu0 0.0
          %2033 = vmatprep.subr.mxu0 0.0
          %2034 = vmatpush2.msra.mxu0 0.0
          %2035 = vmatprep.subr.mxu0 0.0
          %2036 = vmatpush2.msra.mxu0 0.0
          %2037 = vmatprep.subr.mxu0 0.0
          %2038 = vmatpush2.msra.mxu0 0.0
          %2039 = vmatprep.subr.mxu0 0.0
          %2040 = vmatpush2.msra.mxu0 0.0
          %2041 = vmatprep.subr.mxu0 0.0
          %2042 = vmatpush2.msra.mxu0 0.0
          %2043 = vmatprep.subr.mxu0 0.0
          %2044 = vmatpush2.msra.mxu0 0.0
          %2045 = vmatprep.subr.mxu0 0.0
          %2046 = vmatpush2.msra.mxu0 0.0
          %2047 = vmatprep.subr.mxu0 0.0
          %2048 = vmatpush2.msra.mxu0 0.0
          %2049 = vmatprep.subr.mxu0 0.0
          %2050 = vmatpush2.msra.mxu0 0.0
          %2051 = vmatprep.subr.mxu0 0.0
          %2052 = vmatpush2.msra.mxu0 0.0
          %2053 = vmatprep.mubr.f32.mxu0 0.0
          %2054 = vmatmul.mubr.f32.gmra.mxu0 %v1886
          %v2055 = vpop.f32.mrf.mxu0
          %v2056 = vadd.f32 0.0, %v2055
          %v2057 = vpop.f32.mrf.mxu0
          %v2058 = vadd.f32 0.0, %v2057
          %2059 = vmatprep.mubr.f32.mxu0 0.0
          %2060 = vmatmul.mubr.f32.gmra.mxu0 %v1889
          %v2061 = vpop.f32.mrf.mxu0
          %v2062 = vadd.f32 0.0, %v2061
          %v2063 = vpop.f32.mrf.mxu0
          %v2064 = vadd.f32 0.0, %v2063
          %2065 = vmatprep.mubr.f32.mxu0 0.0
          %2066 = vmatmul.mubr.f32.gmra.mxu0 %v1892
          %v2067 = vpop.f32.mrf.mxu0
          %v2068 = vadd.f32 0.0, %v2067
          %v2069 = vpop.f32.mrf.mxu0
          %v2070 = vadd.f32 0.0, %v2069
          %2071 = vdwg.mxu0
          %v2072 = vrcp.pop %v1985
          %v2073 = vrcp.pop %v1987
          %v2074 = vrcp.pop %v2068
          %v2075 = vrcp.pop %v2070
          %v2076 = vmul.f32 %v1985, %v2072
          %v2077 = vmul.f32 %v1987, %v2073
          %v2078 = vmul.f32 %v2068, %v2074
          %v2079 = vmul.f32 %v2070, %v2075
          %v2080 = vsub.f32 2.0, %v2076
          %v2081 = vsub.f32 2.0, %v2077
          %v2082 = vsub.f32 2.0, %v2078
          %v2083 = vsub.f32 2.0, %v2079
          %v2084 = vmul.f32 %v2072, %v2080
          %v2085 = vmul.f32 %v2073, %v2081
          %v2086 = vmul.f32 %v2074, %v2082
          %v2087 = vmul.f32 %v2075, %v2083
          %v2088 = vlaneseq
          %v2089 = vshrl.u32 %v2088, 7
          %v2090 = vsub.s32 4, %v2089
          %v2091 = vrot.slane %v2084, %v2090
          %v2092 = vlaneseq
          %v2093 = vshrl.u32 %v2092, 7
          %v2094 = vsub.s32 4, %v2093
          %v2095 = vrot.slane %v2085, %v2094
          %v2096 = vlaneseq
          %v2097 = vshrl.u32 %v2096, 7
          %v2098 = vsub.s32 4, %v2097
          %v2099 = vrot.slane %v2086, %v2098
          %v2100 = vlaneseq
          %v2101 = vshrl.u32 %v2100, 7
          %v2102 = vsub.s32 4, %v2101
          %v2103 = vrot.slane %v2087, %v2102
          %v2104 = vmul.f32 %v1973, %v2091
          %v2105 = vmul.f32 %v1975, %v2095
          %v2106 = vmul.f32 %v2056, %v2099
          %v2107 = vmul.f32 %v2058, %v2103
          %v2108 = vmul.f32 %v1979, %v2091
          %v2109 = vmul.f32 %v1981, %v2095
          %v2110 = vmul.f32 %v2062, %v2099
          %v2111 = vmul.f32 %v2064, %v2103
          %v2112 = vmul.f32 %v1985, %v2091
          %v2113 = vmul.f32 %v1987, %v2095
          %v2114 = vmul.f32 %v2068, %v2099
          %v2115 = vmul.f32 %v2070, %v2103
          %v2116 = vmul.f32 %v2104, 1.442695
          %v2117 = vpow.pop %v2116
          %v2118 = vmul.f32 %v2105, 1.442695
          %v2119 = vpow.pop %v2118
          %v2120 = vmul.f32 %v2106, 1.442695
          %v2121 = vpow.pop %v2120
          %v2122 = vmul.f32 %v2107, 1.442695
          %v2123 = vpow.pop %v2122
          %v2124 = vmul.f32 %v2108, 1.442695
          %v2125 = vpow.pop %v2124
          %v2126 = vmul.f32 %v2109, 1.442695
          %v2127 = vpow.pop %v2126
          %v2128 = vmul.f32 %v2110, 1.442695
          %v2129 = vpow.pop %v2128
          %v2130 = vmul.f32 %v2111, 1.442695
          %v2131 = vpow.pop %v2130
          %v2132 = vmul.f32 %v2112, 1.442695
          %v2133 = vpow.pop %v2132
          %v2134 = vmul.f32 %v2113, 1.442695
          %v2135 = vpow.pop %v2134
          %v2136 = vmul.f32 %v2114, 1.442695
          %v2137 = vpow.pop %v2136
          %v2138 = vmul.f32 %v2115, 1.442695
          %v2139 = vpow.pop %v2138
          %s2140 = scalar_lea.vmem [#allocation2], 168
          %v2141 = vld [vmem:[%s2140] sm:$0xff]
          %v2142 = vld [vmem:[%s2140 + $0x8] sm:$0xff]
          %v2143 = vld [vmem:[%s2140 + $0x10] sm:$0x1f]
          %v2145 = vsel %vm329, %v2141, 0
          %v2148 = vsel %vm329, %v2142, 0
          %v2151 = vsel %vm329, %v2143, 0
          %v2154 = vsel %vm339, %v2133, 0
          %v2157 = vsel %vm339, %v2135, 0
          %v2160 = vsel %vm339, %v2137, 0
          %v2163 = vsel %vm339, %v2139, 0
          %2165 = vmatprep.subr.mxu0 0.0
          %2166 = vmatpush1.msra.mxu0 0.0
          %2167 = vmatprep.subr.mxu0 0.0
          %2168 = vmatpush1.msra.mxu0 0.0
          %2169 = vmatprep.subr.mxu0 0.0
          %2170 = vmatpush1.msra.mxu0 0.0
          %2171 = vmatprep.subr.mxu0 0.0
          %2172 = vmatpush1.msra.mxu0 0.0
          %2173 = vmatprep.subr.mxu0 0.0
          %2174 = vmatpush1.msra.mxu0 0.0
          %2175 = vmatprep.subr.mxu0 0.0
          %2176 = vmatpush1.msra.mxu0 0.0
          %2177 = vmatprep.subr.mxu0 0.0
          %2178 = vmatpush1.msra.mxu0 0.0
          %2179 = vmatprep.subr.mxu0 0.0
          %2180 = vmatpush1.msra.mxu0 0.0
          %2181 = vmatprep.subr.mxu0 0.0
          %2182 = vmatpush1.msra.mxu0 0.0
          %2183 = vmatprep.subr.mxu0 0.0
          %2184 = vmatpush1.msra.mxu0 0.0
          %2185 = vmatprep.subr.mxu0 0.0
          %2186 = vmatpush1.msra.mxu0 0.0
          %2187 = vmatprep.subr.mxu0 0.0
          %2188 = vmatpush1.msra.mxu0 0.0
          %2189 = vmatprep.subr.mxu0 0.0
          %2190 = vmatpush1.msra.mxu0 0.0
          %2191 = vmatprep.subr.mxu0 %v2157
          %2192 = vmatpush1.msra.mxu0 %v2154
          %2193 = vmatprep.subr.mxu0 %v2127
          %2194 = vmatpush1.msra.mxu0 %v2125
          %2195 = vmatprep.subr.mxu0 %v2119
          %2196 = vmatpush1.msra.mxu0 %v2117
          %2197 = vmatprep.subr.mxu0 0.0
          %2198 = vmatpush2.msra.mxu0 0.0
          %2199 = vmatprep.subr.mxu0 0.0
          %2200 = vmatpush2.msra.mxu0 0.0
          %2201 = vmatprep.subr.mxu0 0.0
          %2202 = vmatpush2.msra.mxu0 0.0
          %2203 = vmatprep.subr.mxu0 0.0
          %2204 = vmatpush2.msra.mxu0 0.0
          %2205 = vmatprep.subr.mxu0 0.0
          %2206 = vmatpush2.msra.mxu0 0.0
          %2207 = vmatprep.subr.mxu0 0.0
          %2208 = vmatpush2.msra.mxu0 0.0
          %2209 = vmatprep.subr.mxu0 0.0
          %2210 = vmatpush2.msra.mxu0 0.0
          %2211 = vmatprep.subr.mxu0 0.0
          %2212 = vmatpush2.msra.mxu0 0.0
          %2213 = vmatprep.subr.mxu0 0.0
          %2214 = vmatpush2.msra.mxu0 0.0
          %2215 = vmatprep.subr.mxu0 0.0
          %2216 = vmatpush2.msra.mxu0 0.0
          %2217 = vmatprep.subr.mxu0 0.0
          %2218 = vmatpush2.msra.mxu0 0.0
          %2219 = vmatprep.subr.mxu0 0.0
          %2220 = vmatpush2.msra.mxu0 0.0
          %2221 = vmatprep.subr.mxu0 0.0
          %2222 = vmatpush2.msra.mxu0 0.0
          %2223 = vmatprep.subr.mxu0 0.0
          %2224 = vmatpush2.msra.mxu0 0.0
          %2225 = vmatprep.subr.mxu0 0.0
          %2226 = vmatpush2.msra.mxu0 0.0
          %2227 = vmatprep.subr.mxu0 0.0
          %2228 = vmatpush2.msra.mxu0 0.0
          %2229 = vmatprep.mubr.f32.mxu0 0.0
          %2230 = vmatmul.mubr.f32.gmra.mxu0 %v2145
          %v2231 = vpop.f32.mrf.mxu0
          %v2232 = vadd.f32 0.0, %v2231
          %v2233 = vpop.f32.mrf.mxu0
          %v2234 = vadd.f32 0.0, %v2233
          %2235 = vmatprep.mubr.f32.mxu0 0.0
          %2236 = vmatmul.mubr.f32.gmra.mxu0 %v2148
          %v2237 = vpop.f32.mrf.mxu0
          %v2238 = vadd.f32 0.0, %v2237
          %v2239 = vpop.f32.mrf.mxu0
          %v2240 = vadd.f32 0.0, %v2239
          %2241 = vmatprep.mubr.f32.mxu0 0.0
          %2242 = vmatmul.mubr.f32.gmra.mxu0 %v2151
          %v2243 = vpop.f32.mrf.mxu0
          %v2244 = vadd.f32 0.0, %v2243
          %v2245 = vpop.f32.mrf.mxu0
          %v2246 = vadd.f32 0.0, %v2245
          %2247 = vdwg.mxu0
          %2248 = vmatprep.subr.mxu0 0.0
          %2249 = vmatpush1.msra.mxu0 0.0
          %2250 = vmatprep.subr.mxu0 0.0
          %2251 = vmatpush1.msra.mxu0 0.0
          %2252 = vmatprep.subr.mxu0 0.0
          %2253 = vmatpush1.msra.mxu0 0.0
          %2254 = vmatprep.subr.mxu0 0.0
          %2255 = vmatpush1.msra.mxu0 0.0
          %2256 = vmatprep.subr.mxu0 0.0
          %2257 = vmatpush1.msra.mxu0 0.0
          %2258 = vmatprep.subr.mxu0 0.0
          %2259 = vmatpush1.msra.mxu0 0.0
          %2260 = vmatprep.subr.mxu0 0.0
          %2261 = vmatpush1.msra.mxu0 0.0
          %2262 = vmatprep.subr.mxu0 0.0
          %2263 = vmatpush1.msra.mxu0 0.0
          %2264 = vmatprep.subr.mxu0 0.0
          %2265 = vmatpush1.msra.mxu0 0.0
          %2266 = vmatprep.subr.mxu0 0.0
          %2267 = vmatpush1.msra.mxu0 0.0
          %2268 = vmatprep.subr.mxu0 0.0
          %2269 = vmatpush1.msra.mxu0 0.0
          %2270 = vmatprep.subr.mxu0 0.0
          %2271 = vmatpush1.msra.mxu0 0.0
          %2272 = vmatprep.subr.mxu0 0.0
          %2273 = vmatpush1.msra.mxu0 0.0
          %2274 = vmatprep.subr.mxu0 %v2163
          %2275 = vmatpush1.msra.mxu0 %v2160
          %2276 = vmatprep.subr.mxu0 %v2131
          %2277 = vmatpush1.msra.mxu0 %v2129
          %2278 = vmatprep.subr.mxu0 %v2123
          %2279 = vmatpush1.msra.mxu0 %v2121
          %2280 = vmatprep.subr.mxu0 0.0
          %2281 = vmatpush2.msra.mxu0 0.0
          %2282 = vmatprep.subr.mxu0 0.0
          %2283 = vmatpush2.msra.mxu0 0.0
          %2284 = vmatprep.subr.mxu0 0.0
          %2285 = vmatpush2.msra.mxu0 0.0
          %2286 = vmatprep.subr.mxu0 0.0
          %2287 = vmatpush2.msra.mxu0 0.0
          %2288 = vmatprep.subr.mxu0 0.0
          %2289 = vmatpush2.msra.mxu0 0.0
          %2290 = vmatprep.subr.mxu0 0.0
          %2291 = vmatpush2.msra.mxu0 0.0
          %2292 = vmatprep.subr.mxu0 0.0
          %2293 = vmatpush2.msra.mxu0 0.0
          %2294 = vmatprep.subr.mxu0 0.0
          %2295 = vmatpush2.msra.mxu0 0.0
          %2296 = vmatprep.subr.mxu0 0.0
          %2297 = vmatpush2.msra.mxu0 0.0
          %2298 = vmatprep.subr.mxu0 0.0
          %2299 = vmatpush2.msra.mxu0 0.0
          %2300 = vmatprep.subr.mxu0 0.0
          %2301 = vmatpush2.msra.mxu0 0.0
          %2302 = vmatprep.subr.mxu0 0.0
          %2303 = vmatpush2.msra.mxu0 0.0
          %2304 = vmatprep.subr.mxu0 0.0
          %2305 = vmatpush2.msra.mxu0 0.0
          %2306 = vmatprep.subr.mxu0 0.0
          %2307 = vmatpush2.msra.mxu0 0.0
          %2308 = vmatprep.subr.mxu0 0.0
          %2309 = vmatpush2.msra.mxu0 0.0
          %2310 = vmatprep.subr.mxu0 0.0
          %2311 = vmatpush2.msra.mxu0 0.0
          %2312 = vmatprep.mubr.f32.mxu0 0.0
          %2313 = vmatmul.mubr.f32.gmra.mxu0 %v2145
          %v2314 = vpop.f32.mrf.mxu0
          %v2315 = vadd.f32 0.0, %v2314
          %v2316 = vpop.f32.mrf.mxu0
          %v2317 = vadd.f32 0.0, %v2316
          %2318 = vmatprep.mubr.f32.mxu0 0.0
          %2319 = vmatmul.mubr.f32.gmra.mxu0 %v2148
          %v2320 = vpop.f32.mrf.mxu0
          %v2321 = vadd.f32 0.0, %v2320
          %v2322 = vpop.f32.mrf.mxu0
          %v2323 = vadd.f32 0.0, %v2322
          %2324 = vmatprep.mubr.f32.mxu0 0.0
          %2325 = vmatmul.mubr.f32.gmra.mxu0 %v2151
          %v2326 = vpop.f32.mrf.mxu0
          %v2327 = vadd.f32 0.0, %v2326
          %v2328 = vpop.f32.mrf.mxu0
          %v2329 = vadd.f32 0.0, %v2328
          %2330 = vdwg.mxu0
          %v2331 = vrcp.pop %v2244
          %v2332 = vrcp.pop %v2246
          %v2333 = vrcp.pop %v2327
          %v2334 = vrcp.pop %v2329
          %v2335 = vmul.f32 %v2244, %v2331
          %v2336 = vmul.f32 %v2246, %v2332
          %v2337 = vmul.f32 %v2327, %v2333
          %v2338 = vmul.f32 %v2329, %v2334
          %v2339 = vsub.f32 2.0, %v2335
          %v2340 = vsub.f32 2.0, %v2336
          %v2341 = vsub.f32 2.0, %v2337
          %v2342 = vsub.f32 2.0, %v2338
          %v2343 = vmul.f32 %v2331, %v2339
          %v2344 = vmul.f32 %v2332, %v2340
          %v2345 = vmul.f32 %v2333, %v2341
          %v2346 = vmul.f32 %v2334, %v2342
          %v2347 = vlaneseq
          %v2348 = vshrl.u32 %v2347, 7
          %v2349 = vsub.s32 4, %v2348
          %v2350 = vrot.slane %v2343, %v2349
          %v2351 = vlaneseq
          %v2352 = vshrl.u32 %v2351, 7
          %v2353 = vsub.s32 4, %v2352
          %v2354 = vrot.slane %v2344, %v2353
          %v2355 = vlaneseq
          %v2356 = vshrl.u32 %v2355, 7
          %v2357 = vsub.s32 4, %v2356
          %v2358 = vrot.slane %v2345, %v2357
          %v2359 = vlaneseq
          %v2360 = vshrl.u32 %v2359, 7
          %v2361 = vsub.s32 4, %v2360
          %v2362 = vrot.slane %v2346, %v2361
          %v2363 = vmul.f32 %v2232, %v2350
          %v2364 = vmul.f32 %v2234, %v2354
          %v2365 = vmul.f32 %v2315, %v2358
          %v2366 = vmul.f32 %v2317, %v2362
          %v2367 = vmul.f32 %v2238, %v2350
          %v2368 = vmul.f32 %v2240, %v2354
          %v2369 = vmul.f32 %v2321, %v2358
          %v2370 = vmul.f32 %v2323, %v2362
          %v2371 = vmul.f32 %v2244, %v2350
          %v2372 = vmul.f32 %v2246, %v2354
          %v2373 = vmul.f32 %v2327, %v2358
          %v2374 = vmul.f32 %v2329, %v2362
          %v2375 = vmul.f32 %v2363, 1.442695
          %v2376 = vpow.pop %v2375
          %v2377 = vmul.f32 %v2364, 1.442695
          %v2378 = vpow.pop %v2377
          %v2379 = vmul.f32 %v2365, 1.442695
          %v2380 = vpow.pop %v2379
          %v2381 = vmul.f32 %v2366, 1.442695
          %v2382 = vpow.pop %v2381
          %v2383 = vmul.f32 %v2367, 1.442695
          %v2384 = vpow.pop %v2383
          %v2385 = vmul.f32 %v2368, 1.442695
          %v2386 = vpow.pop %v2385
          %v2387 = vmul.f32 %v2369, 1.442695
          %v2388 = vpow.pop %v2387
          %v2389 = vmul.f32 %v2370, 1.442695
          %v2390 = vpow.pop %v2389
          %v2391 = vmul.f32 %v2371, 1.442695
          %v2392 = vpow.pop %v2391
          %v2393 = vmul.f32 %v2372, 1.442695
          %v2394 = vpow.pop %v2393
          %v2395 = vmul.f32 %v2373, 1.442695
          %v2396 = vpow.pop %v2395
          %v2397 = vmul.f32 %v2374, 1.442695
          %v2398 = vpow.pop %v2397
          %s2399 = scalar_lea.vmem [#allocation2], 192
          %v2400 = vld [vmem:[%s2399] sm:$0xff]
          %v2401 = vld [vmem:[%s2399 + $0x8] sm:$0xff]
          %v2402 = vld [vmem:[%s2399 + $0x10] sm:$0x1f]
          %v2404 = vsel %vm329, %v2400, 0
          %v2407 = vsel %vm329, %v2401, 0
          %v2410 = vsel %vm329, %v2402, 0
          %v2413 = vsel %vm339, %v2392, 0
          %v2416 = vsel %vm339, %v2394, 0
          %v2419 = vsel %vm339, %v2396, 0
          %v2422 = vsel %vm339, %v2398, 0
          %2424 = vmatprep.subr.mxu0 0.0
          %2425 = vmatpush1.msra.mxu0 0.0
          %2426 = vmatprep.subr.mxu0 0.0
          %2427 = vmatpush1.msra.mxu0 0.0
          %2428 = vmatprep.subr.mxu0 0.0
          %2429 = vmatpush1.msra.mxu0 0.0
          %2430 = vmatprep.subr.mxu0 0.0
          %2431 = vmatpush1.msra.mxu0 0.0
          %2432 = vmatprep.subr.mxu0 0.0
          %2433 = vmatpush1.msra.mxu0 0.0
          %2434 = vmatprep.subr.mxu0 0.0
          %2435 = vmatpush1.msra.mxu0 0.0
          %2436 = vmatprep.subr.mxu0 0.0
          %2437 = vmatpush1.msra.mxu0 0.0
          %2438 = vmatprep.subr.mxu0 0.0
          %2439 = vmatpush1.msra.mxu0 0.0
          %2440 = vmatprep.subr.mxu0 0.0
          %2441 = vmatpush1.msra.mxu0 0.0
          %2442 = vmatprep.subr.mxu0 0.0
          %2443 = vmatpush1.msra.mxu0 0.0
          %2444 = vmatprep.subr.mxu0 0.0
          %2445 = vmatpush1.msra.mxu0 0.0
          %2446 = vmatprep.subr.mxu0 0.0
          %2447 = vmatpush1.msra.mxu0 0.0
          %2448 = vmatprep.subr.mxu0 0.0
          %2449 = vmatpush1.msra.mxu0 0.0
          %2450 = vmatprep.subr.mxu0 %v2416
          %2451 = vmatpush1.msra.mxu0 %v2413
          %2452 = vmatprep.subr.mxu0 %v2386
          %2453 = vmatpush1.msra.mxu0 %v2384
          %2454 = vmatprep.subr.mxu0 %v2378
          %2455 = vmatpush1.msra.mxu0 %v2376
          %2456 = vmatprep.subr.mxu0 0.0
          %2457 = vmatpush2.msra.mxu0 0.0
          %2458 = vmatprep.subr.mxu0 0.0
          %2459 = vmatpush2.msra.mxu0 0.0
          %2460 = vmatprep.subr.mxu0 0.0
          %2461 = vmatpush2.msra.mxu0 0.0
          %2462 = vmatprep.subr.mxu0 0.0
          %2463 = vmatpush2.msra.mxu0 0.0
          %2464 = vmatprep.subr.mxu0 0.0
          %2465 = vmatpush2.msra.mxu0 0.0
          %2466 = vmatprep.subr.mxu0 0.0
          %2467 = vmatpush2.msra.mxu0 0.0
          %2468 = vmatprep.subr.mxu0 0.0
          %2469 = vmatpush2.msra.mxu0 0.0
          %2470 = vmatprep.subr.mxu0 0.0
          %2471 = vmatpush2.msra.mxu0 0.0
          %2472 = vmatprep.subr.mxu0 0.0
          %2473 = vmatpush2.msra.mxu0 0.0
          %2474 = vmatprep.subr.mxu0 0.0
          %2475 = vmatpush2.msra.mxu0 0.0
          %2476 = vmatprep.subr.mxu0 0.0
          %2477 = vmatpush2.msra.mxu0 0.0
          %2478 = vmatprep.subr.mxu0 0.0
          %2479 = vmatpush2.msra.mxu0 0.0
          %2480 = vmatprep.subr.mxu0 0.0
          %2481 = vmatpush2.msra.mxu0 0.0
          %2482 = vmatprep.subr.mxu0 0.0
          %2483 = vmatpush2.msra.mxu0 0.0
          %2484 = vmatprep.subr.mxu0 0.0
          %2485 = vmatpush2.msra.mxu0 0.0
          %2486 = vmatprep.subr.mxu0 0.0
          %2487 = vmatpush2.msra.mxu0 0.0
          %2488 = vmatprep.mubr.f32.mxu0 0.0
          %2489 = vmatmul.mubr.f32.gmra.mxu0 %v2404
          %v2490 = vpop.f32.mrf.mxu0
          %v2491 = vadd.f32 0.0, %v2490
          %v2492 = vpop.f32.mrf.mxu0
          %v2493 = vadd.f32 0.0, %v2492
          %2494 = vmatprep.mubr.f32.mxu0 0.0
          %2495 = vmatmul.mubr.f32.gmra.mxu0 %v2407
          %v2496 = vpop.f32.mrf.mxu0
          %v2497 = vadd.f32 0.0, %v2496
          %v2498 = vpop.f32.mrf.mxu0
          %v2499 = vadd.f32 0.0, %v2498
          %2500 = vmatprep.mubr.f32.mxu0 0.0
          %2501 = vmatmul.mubr.f32.gmra.mxu0 %v2410
          %v2502 = vpop.f32.mrf.mxu0
          %v2503 = vadd.f32 0.0, %v2502
          %v2504 = vpop.f32.mrf.mxu0
          %v2505 = vadd.f32 0.0, %v2504
          %2506 = vdwg.mxu0
          %2507 = vmatprep.subr.mxu0 0.0
          %2508 = vmatpush1.msra.mxu0 0.0
          %2509 = vmatprep.subr.mxu0 0.0
          %2510 = vmatpush1.msra.mxu0 0.0
          %2511 = vmatprep.subr.mxu0 0.0
          %2512 = vmatpush1.msra.mxu0 0.0
          %2513 = vmatprep.subr.mxu0 0.0
          %2514 = vmatpush1.msra.mxu0 0.0
          %2515 = vmatprep.subr.mxu0 0.0
          %2516 = vmatpush1.msra.mxu0 0.0
          %2517 = vmatprep.subr.mxu0 0.0
          %2518 = vmatpush1.msra.mxu0 0.0
          %2519 = vmatprep.subr.mxu0 0.0
          %2520 = vmatpush1.msra.mxu0 0.0
          %2521 = vmatprep.subr.mxu0 0.0
          %2522 = vmatpush1.msra.mxu0 0.0
          %2523 = vmatprep.subr.mxu0 0.0
          %2524 = vmatpush1.msra.mxu0 0.0
          %2525 = vmatprep.subr.mxu0 0.0
          %2526 = vmatpush1.msra.mxu0 0.0
          %2527 = vmatprep.subr.mxu0 0.0
          %2528 = vmatpush1.msra.mxu0 0.0
          %2529 = vmatprep.subr.mxu0 0.0
          %2530 = vmatpush1.msra.mxu0 0.0
          %2531 = vmatprep.subr.mxu0 0.0
          %2532 = vmatpush1.msra.mxu0 0.0
          %2533 = vmatprep.subr.mxu0 %v2422
          %2534 = vmatpush1.msra.mxu0 %v2419
          %2535 = vmatprep.subr.mxu0 %v2390
          %2536 = vmatpush1.msra.mxu0 %v2388
          %2537 = vmatprep.subr.mxu0 %v2382
          %2538 = vmatpush1.msra.mxu0 %v2380
          %2539 = vmatprep.subr.mxu0 0.0
          %2540 = vmatpush2.msra.mxu0 0.0
          %2541 = vmatprep.subr.mxu0 0.0
          %2542 = vmatpush2.msra.mxu0 0.0
          %2543 = vmatprep.subr.mxu0 0.0
          %2544 = vmatpush2.msra.mxu0 0.0
          %2545 = vmatprep.subr.mxu0 0.0
          %2546 = vmatpush2.msra.mxu0 0.0
          %2547 = vmatprep.subr.mxu0 0.0
          %2548 = vmatpush2.msra.mxu0 0.0
          %2549 = vmatprep.subr.mxu0 0.0
          %2550 = vmatpush2.msra.mxu0 0.0
          %2551 = vmatprep.subr.mxu0 0.0
          %2552 = vmatpush2.msra.mxu0 0.0
          %2553 = vmatprep.subr.mxu0 0.0
          %2554 = vmatpush2.msra.mxu0 0.0
          %2555 = vmatprep.subr.mxu0 0.0
          %2556 = vmatpush2.msra.mxu0 0.0
          %2557 = vmatprep.subr.mxu0 0.0
          %2558 = vmatpush2.msra.mxu0 0.0
          %2559 = vmatprep.subr.mxu0 0.0
          %2560 = vmatpush2.msra.mxu0 0.0
          %2561 = vmatprep.subr.mxu0 0.0
          %2562 = vmatpush2.msra.mxu0 0.0
          %2563 = vmatprep.subr.mxu0 0.0
          %2564 = vmatpush2.msra.mxu0 0.0
          %2565 = vmatprep.subr.mxu0 0.0
          %2566 = vmatpush2.msra.mxu0 0.0
          %2567 = vmatprep.subr.mxu0 0.0
          %2568 = vmatpush2.msra.mxu0 0.0
          %2569 = vmatprep.subr.mxu0 0.0
          %2570 = vmatpush2.msra.mxu0 0.0
          %2571 = vmatprep.mubr.f32.mxu0 0.0
          %2572 = vmatmul.mubr.f32.gmra.mxu0 %v2404
          %v2573 = vpop.f32.mrf.mxu0
          %v2574 = vadd.f32 0.0, %v2573
          %v2575 = vpop.f32.mrf.mxu0
          %v2576 = vadd.f32 0.0, %v2575
          %2577 = vmatprep.mubr.f32.mxu0 0.0
          %2578 = vmatmul.mubr.f32.gmra.mxu0 %v2407
          %v2579 = vpop.f32.mrf.mxu0
          %v2580 = vadd.f32 0.0, %v2579
          %v2581 = vpop.f32.mrf.mxu0
          %v2582 = vadd.f32 0.0, %v2581
          %2583 = vmatprep.mubr.f32.mxu0 0.0
          %2584 = vmatmul.mubr.f32.gmra.mxu0 %v2410
          %v2585 = vpop.f32.mrf.mxu0
          %v2586 = vadd.f32 0.0, %v2585
          %v2587 = vpop.f32.mrf.mxu0
          %v2588 = vadd.f32 0.0, %v2587
          %2589 = vdwg.mxu0
          %v2590 = vrcp.pop %v2503
          %v2591 = vrcp.pop %v2505
          %v2592 = vrcp.pop %v2586
          %v2593 = vrcp.pop %v2588
          %v2594 = vmul.f32 %v2503, %v2590
          %v2595 = vmul.f32 %v2505, %v2591
          %v2596 = vmul.f32 %v2586, %v2592
          %v2597 = vmul.f32 %v2588, %v2593
          %v2598 = vsub.f32 2.0, %v2594
          %v2599 = vsub.f32 2.0, %v2595
          %v2600 = vsub.f32 2.0, %v2596
          %v2601 = vsub.f32 2.0, %v2597
          %v2602 = vmul.f32 %v2590, %v2598
          %v2603 = vmul.f32 %v2591, %v2599
          %v2604 = vmul.f32 %v2592, %v2600
          %v2605 = vmul.f32 %v2593, %v2601
          %v2606 = vlaneseq
          %v2607 = vshrl.u32 %v2606, 7
          %v2608 = vsub.s32 4, %v2607
          %v2609 = vrot.slane %v2602, %v2608
          %v2610 = vlaneseq
          %v2611 = vshrl.u32 %v2610, 7
          %v2612 = vsub.s32 4, %v2611
          %v2613 = vrot.slane %v2603, %v2612
          %v2614 = vlaneseq
          %v2615 = vshrl.u32 %v2614, 7
          %v2616 = vsub.s32 4, %v2615
          %v2617 = vrot.slane %v2604, %v2616
          %v2618 = vlaneseq
          %v2619 = vshrl.u32 %v2618, 7
          %v2620 = vsub.s32 4, %v2619
          %v2621 = vrot.slane %v2605, %v2620
          %v2622 = vmul.f32 %v2491, %v2609
          %v2623 = vmul.f32 %v2493, %v2613
          %v2624 = vmul.f32 %v2574, %v2617
          %v2625 = vmul.f32 %v2576, %v2621
          %v2626 = vmul.f32 %v2497, %v2609
          %v2627 = vmul.f32 %v2499, %v2613
          %v2628 = vmul.f32 %v2580, %v2617
          %v2629 = vmul.f32 %v2582, %v2621
          %v2630 = vmul.f32 %v2503, %v2609
          %v2631 = vmul.f32 %v2505, %v2613
          %v2632 = vmul.f32 %v2586, %v2617
          %v2633 = vmul.f32 %v2588, %v2621
          %v2634 = vmul.f32 %v2622, 1.442695
          %v2635 = vpow.pop %v2634
          %v2636 = vmul.f32 %v2623, 1.442695
          %v2637 = vpow.pop %v2636
          %v2638 = vmul.f32 %v2624, 1.442695
          %v2639 = vpow.pop %v2638
          %v2640 = vmul.f32 %v2625, 1.442695
          %v2641 = vpow.pop %v2640
          %v2642 = vmul.f32 %v2626, 1.442695
          %v2643 = vpow.pop %v2642
          %v2644 = vmul.f32 %v2627, 1.442695
          %v2645 = vpow.pop %v2644
          %v2646 = vmul.f32 %v2628, 1.442695
          %v2647 = vpow.pop %v2646
          %v2648 = vmul.f32 %v2629, 1.442695
          %v2649 = vpow.pop %v2648
          %v2650 = vmul.f32 %v2630, 1.442695
          %v2651 = vpow.pop %v2650
          %v2652 = vmul.f32 %v2631, 1.442695
          %v2653 = vpow.pop %v2652
          %v2654 = vmul.f32 %v2632, 1.442695
          %v2655 = vpow.pop %v2654
          %v2656 = vmul.f32 %v2633, 1.442695
          %v2657 = vpow.pop %v2656
          %v2659 = vsel %vm329, %v241, 0
          %v2662 = vsel %vm339, %v2651, 0
          %v2665 = vsel %vm339, %v2653, 0
          %v2668 = vsel %vm339, %v2655, 0
          %v2671 = vsel %vm339, %v2657, 0
          %2673 = vmatprep.subr.mxu0 0.0
          %2674 = vmatpush1.msra.mxu0 0.0
          %2675 = vmatprep.subr.mxu0 0.0
          %2676 = vmatpush1.msra.mxu0 0.0
          %2677 = vmatprep.subr.mxu0 0.0
          %2678 = vmatpush1.msra.mxu0 0.0
          %2679 = vmatprep.subr.mxu0 0.0
          %2680 = vmatpush1.msra.mxu0 0.0
          %2681 = vmatprep.subr.mxu0 0.0
          %2682 = vmatpush1.msra.mxu0 0.0
          %2683 = vmatprep.subr.mxu0 0.0
          %2684 = vmatpush1.msra.mxu0 0.0
          %2685 = vmatprep.subr.mxu0 0.0
          %2686 = vmatpush1.msra.mxu0 0.0
          %2687 = vmatprep.subr.mxu0 0.0
          %2688 = vmatpush1.msra.mxu0 0.0
          %2689 = vmatprep.subr.mxu0 0.0
          %2690 = vmatpush1.msra.mxu0 0.0
          %2691 = vmatprep.subr.mxu0 0.0
          %2692 = vmatpush1.msra.mxu0 0.0
          %2693 = vmatprep.subr.mxu0 0.0
          %2694 = vmatpush1.msra.mxu0 0.0
          %2695 = vmatprep.subr.mxu0 0.0
          %2696 = vmatpush1.msra.mxu0 0.0
          %2697 = vmatprep.subr.mxu0 0.0
          %2698 = vmatpush1.msra.mxu0 0.0
          %2699 = vmatprep.subr.mxu0 %v2665
          %2700 = vmatpush1.msra.mxu0 %v2662
          %2701 = vmatprep.subr.mxu0 %v2645
          %2702 = vmatpush1.msra.mxu0 %v2643
          %2703 = vmatprep.subr.mxu0 %v2637
          %2704 = vmatpush1.msra.mxu0 %v2635
          %2705 = vmatprep.subr.mxu0 0.0
          %2706 = vmatpush2.msra.mxu0 0.0
          %2707 = vmatprep.subr.mxu0 0.0
          %2708 = vmatpush2.msra.mxu0 0.0
          %2709 = vmatprep.subr.mxu0 0.0
          %2710 = vmatpush2.msra.mxu0 0.0
          %2711 = vmatprep.subr.mxu0 0.0
          %2712 = vmatpush2.msra.mxu0 0.0
          %2713 = vmatprep.subr.mxu0 0.0
          %2714 = vmatpush2.msra.mxu0 0.0
          %2715 = vmatprep.subr.mxu0 0.0
          %2716 = vmatpush2.msra.mxu0 0.0
          %2717 = vmatprep.subr.mxu0 0.0
          %2718 = vmatpush2.msra.mxu0 0.0
          %2719 = vmatprep.subr.mxu0 0.0
          %2720 = vmatpush2.msra.mxu0 0.0
          %2721 = vmatprep.subr.mxu0 0.0
          %2722 = vmatpush2.msra.mxu0 0.0
          %2723 = vmatprep.subr.mxu0 0.0
          %2724 = vmatpush2.msra.mxu0 0.0
          %2725 = vmatprep.subr.mxu0 0.0
          %2726 = vmatpush2.msra.mxu0 0.0
          %2727 = vmatprep.subr.mxu0 0.0
          %2728 = vmatpush2.msra.mxu0 0.0
          %2729 = vmatprep.subr.mxu0 0.0
          %2730 = vmatpush2.msra.mxu0 0.0
          %2731 = vmatprep.subr.mxu0 0.0
          %2732 = vmatpush2.msra.mxu0 0.0
          %2733 = vmatprep.subr.mxu0 0.0
          %2734 = vmatpush2.msra.mxu0 0.0
          %2735 = vmatprep.subr.mxu0 0.0
          %2736 = vmatpush2.msra.mxu0 0.0
          %2737 = vmatprep.mubr.f32.mxu0 0.0
          %2738 = vmatmul.mubr.f32.gmra.mxu0 %v2659
          %v2739 = vpop.f32.mrf.mxu0
          %v2740 = vadd.f32 0.0, %v2739
          %v2741 = vpop.f32.mrf.mxu0
          %v2742 = vadd.f32 0.0, %v2741
          %2743 = vdwg.mxu0
          %2744 = vmatprep.subr.mxu0 0.0
          %2745 = vmatpush1.msra.mxu0 0.0
          %2746 = vmatprep.subr.mxu0 0.0
          %2747 = vmatpush1.msra.mxu0 0.0
          %2748 = vmatprep.subr.mxu0 0.0
          %2749 = vmatpush1.msra.mxu0 0.0
          %2750 = vmatprep.subr.mxu0 0.0
          %2751 = vmatpush1.msra.mxu0 0.0
          %2752 = vmatprep.subr.mxu0 0.0
          %2753 = vmatpush1.msra.mxu0 0.0
          %2754 = vmatprep.subr.mxu0 0.0
          %2755 = vmatpush1.msra.mxu0 0.0
          %2756 = vmatprep.subr.mxu0 0.0
          %2757 = vmatpush1.msra.mxu0 0.0
          %2758 = vmatprep.subr.mxu0 0.0
          %2759 = vmatpush1.msra.mxu0 0.0
          %2760 = vmatprep.subr.mxu0 0.0
          %2761 = vmatpush1.msra.mxu0 0.0
          %2762 = vmatprep.subr.mxu0 0.0
          %2763 = vmatpush1.msra.mxu0 0.0
          %2764 = vmatprep.subr.mxu0 0.0
          %2765 = vmatpush1.msra.mxu0 0.0
          %2766 = vmatprep.subr.mxu0 0.0
          %2767 = vmatpush1.msra.mxu0 0.0
          %2768 = vmatprep.subr.mxu0 0.0
          %2769 = vmatpush1.msra.mxu0 0.0
          %2770 = vmatprep.subr.mxu0 %v2671
          %2771 = vmatpush1.msra.mxu0 %v2668
          %2772 = vmatprep.subr.mxu0 %v2649
          %2773 = vmatpush1.msra.mxu0 %v2647
          %2774 = vmatprep.subr.mxu0 %v2641
          %2775 = vmatpush1.msra.mxu0 %v2639
          %2776 = vmatprep.subr.mxu0 0.0
          %2777 = vmatpush2.msra.mxu0 0.0
          %2778 = vmatprep.subr.mxu0 0.0
          %2779 = vmatpush2.msra.mxu0 0.0
          %2780 = vmatprep.subr.mxu0 0.0
          %2781 = vmatpush2.msra.mxu0 0.0
          %2782 = vmatprep.subr.mxu0 0.0
          %2783 = vmatpush2.msra.mxu0 0.0
          %2784 = vmatprep.subr.mxu0 0.0
          %2785 = vmatpush2.msra.mxu0 0.0
          %2786 = vmatprep.subr.mxu0 0.0
          %2787 = vmatpush2.msra.mxu0 0.0
          %2788 = vmatprep.subr.mxu0 0.0
          %2789 = vmatpush2.msra.mxu0 0.0
          %2790 = vmatprep.subr.mxu0 0.0
          %2791 = vmatpush2.msra.mxu0 0.0
          %2792 = vmatprep.subr.mxu0 0.0
          %2793 = vmatpush2.msra.mxu0 0.0
          %2794 = vmatprep.subr.mxu0 0.0
          %2795 = vmatpush2.msra.mxu0 0.0
          %2796 = vmatprep.subr.mxu0 0.0
          %2797 = vmatpush2.msra.mxu0 0.0
          %2798 = vmatprep.subr.mxu0 0.0
          %2799 = vmatpush2.msra.mxu0 0.0
          %2800 = vmatprep.subr.mxu0 0.0
          %2801 = vmatpush2.msra.mxu0 0.0
          %2802 = vmatprep.subr.mxu0 0.0
          %2803 = vmatpush2.msra.mxu0 0.0
          %2804 = vmatprep.subr.mxu0 0.0
          %2805 = vmatpush2.msra.mxu0 0.0
          %2806 = vmatprep.subr.mxu0 0.0
          %2807 = vmatpush2.msra.mxu0 0.0
          %2808 = vmatprep.mubr.f32.mxu0 0.0
          %2809 = vmatmul.mubr.f32.gmra.mxu0 %v2659
          %v2810 = vpop.f32.mrf.mxu0
          %v2811 = vadd.f32 0.0, %v2810
          %v2812 = vpop.f32.mrf.mxu0
          %v2813 = vadd.f32 0.0, %v2812
          %2814 = vdwg.mxu0
          %v2815 = vrcp.pop %v2740
          %v2816 = vrcp.pop %v2742
          %v2817 = vrcp.pop %v2811
          %v2818 = vrcp.pop %v2813
          %v2819 = vmul.f32 %v2740, %v2815
          %v2820 = vmul.f32 %v2742, %v2816
          %v2821 = vmul.f32 %v2811, %v2817
          %v2822 = vmul.f32 %v2813, %v2818
          %v2823 = vsub.f32 2.0, %v2819
          %v2824 = vsub.f32 2.0, %v2820
          %v2825 = vsub.f32 2.0, %v2821
          %v2826 = vsub.f32 2.0, %v2822
          %v2827 = vmul.f32 %v2815, %v2823
          %v2828 = vmul.f32 %v2816, %v2824
          %v2829 = vmul.f32 %v2817, %v2825
          %v2830 = vmul.f32 %v2818, %v2826
          %v2831 = vlaneseq
          %v2832 = vshrl.u32 %v2831, 7
          %v2833 = vsub.s32 2, %v2832
          %v2834 = vrot.slane %v2827, %v2833
          %v2835 = vlaneseq
          %v2836 = vshrl.u32 %v2835, 7
          %v2837 = vsub.s32 2, %v2836
          %v2838 = vrot.slane %v2828, %v2837
          %v2839 = vlaneseq
          %v2840 = vshrl.u32 %v2839, 7
          %v2841 = vsub.s32 2, %v2840
          %v2842 = vrot.slane %v2829, %v2841
          %v2843 = vlaneseq
          %v2844 = vshrl.u32 %v2843, 7
          %v2845 = vsub.s32 2, %v2844
          %v2846 = vrot.slane %v2830, %v2845
          %v2847 = vmul.f32 %v2740, %v2834
          %v2848 = vmul.f32 %v2742, %v2838
          %v2849 = vmul.f32 %v2811, %v2842
          %v2850 = vmul.f32 %v2813, %v2846
          %2852 = vset.pattern.permute.xlu0 0
          %2853 = vperm.xlu0 %2852, %v242
          %v2854 = vpop.permute.xlu0 %2853
          %v2856 = vadd.f32 %v2847, %v2854
          %v2857 = vadd.f32 %v2848, %v2854
          %v2858 = vadd.f32 %v2849, %v2854
          %v2859 = vadd.f32 %v2850, %v2854
          %v2864 = vcombine.low %v2856, %v2857
          %v2865 = vcombine.low %v2858, %v2859
          %v2867 = vunpack.c.l.s4 1983009808
          %v2868 = vunpack.c.0.s8 %v2867
          %v2869 = vlaneseq
          %v2870 = vshrl.u32 %v2869, 7
          %v2871 = vsub.s32 %v2868, %v2870
          %v2872 = vrot.slane %v2864, %v2871
          %v2874 = vunpack.c.l.s4 1983009808
          %v2875 = vunpack.c.0.s8 %v2874
          %v2876 = vlaneseq
          %v2877 = vshrl.u32 %v2876, 7
          %v2878 = vsub.s32 %v2875, %v2877
          %v2879 = vrot.slane %v2865, %v2878
          %v2880 = vcombine.low %v2872, %v2879
          %s2882 = smul.addr %s250, 2
          %s2883 = scalar_lea.vmem %s231, %s2882 [#allocation5]
          %2884 = vst [vmem:[%s2883] sm:$0xff] %v2880
        $region49: #{tpu_custom_call.1} parent=39 // loop_footer
          %s248 = sadd.s32 1, %s244
        $region50: #{tpu_custom_call.1} parent=39 // loop_footer_branch
          %243 = sbr.rel target = $region46
        $region51: #{tpu_custom_call.1} parent=39 // loop_exit
          _
        %s2885 = sand.u32 %s138, 1
        %s2886 = scalar_lea.sflag [#allocation4], %s2885
        %s2887 = sand.u32 %s138, 1
        %s2888 = smul.addr %s2887, 24
        %s2889 = scalar_lea.vmem [#allocation5], %s2888
        // Predicated region
        $region52: #{tpu_custom_call.1} parent=39 // pred_check
          %p2890 = pneg %p148
        $region53: #{tpu_custom_call.1} parent=39 // pred_check_branch
          %2892 = sbr.rel (%p2890) target = $region55
        $region54: #{tpu_custom_call.1} parent=39 // pred_region
          %s2893 = smul.u32 12, %s20
          %s2895 = ssub.s32 384, 384
          %2896 = vsyncadd %s2886, %s2895
          %s2897 = smul.addr %s2893, 32
          %s2898 = scalar_lea.hbm %s5, %s2897
          %s2900 = sshll.u32 %s2889, 4
          %s2901 = int_to_ptr.vmem [resolvable:$true] %s2900
          %2903 = dma.vmem_to_hbm [thread:$0]  %s2901, 384, %s2898, %s2886
        $region55: #{tpu_custom_call.1} parent=39 // pred_fallthru
          _
      $region40: #{tpu_custom_call.1} parent=5 // pred_fallthru
        _
      %p2904 = scmp.le.s32.totalorder 2, %s15
      // Predicated region
      $region56: #{tpu_custom_call.1} parent=5 // pred_check
        %p2905 = pneg %p2904
      $region57: #{tpu_custom_call.1} parent=5 // pred_check_branch
        %2907 = sbr.rel (%p2905) target = $region59
      $region58: #{tpu_custom_call.1} parent=5 // pred_region
        %s2908 = ssub.s32 %s15, 2
        // Predicated region
        $region60: #{tpu_custom_call.1} parent=58 // pred_check
          %p2909 = pneg %p154
        $region61: #{tpu_custom_call.1} parent=58 // pred_check_branch
          %2911 = sbr.rel (%p2909) target = $region63
        $region62: #{tpu_custom_call.1} parent=58 // pred_region
          %s2912 = sand.u32 %s139, 1
          %s2913 = scalar_lea.sflag [#allocation4], %s2912
          %s2914 = sand.u32 %s139, 1
          %s2915 = smul.addr %s2914, 24
          %s2916 = scalar_lea.vmem [#allocation5], %s2915
          %2917 = dma.done %s2913, 384
        $region63: #{tpu_custom_call.1} parent=58 // pred_fallthru
          _
      $region59: #{tpu_custom_call.1} parent=5 // pred_fallthru
        _
    $region6: #{tpu_custom_call.1} parent=1 // loop_footer
      %s19 = sadd.s32 1, %s15
    $region7: #{tpu_custom_call.1} parent=1 // loop_footer_branch
      %14 = sbr.rel target = $region3
    $region8: #{tpu_custom_call.1} parent=1 // loop_exit
      _
    %2918 = vsyncpa [#allocation3], 1
    %s2919 = scalar_lea.sflag [#allocation3], 1
    %2920 = vsyncpa %s2919, 1
    %2921 = vsyncpa [#allocation4], 1
    %s2922 = scalar_lea.sflag [#allocation4], 1
    %2923 = vsyncpa %s2922, 1

</llo_original>
